<compile_context>
chip_gen: v6e
topology: v6e:2x2x1
jax: 0.10.0
libtpu: 0.0.40
codegen_flags: <defaults>
</compile_context>

<pallas_src>
import functools

import jax
import jax.numpy as jnp
from jax.experimental import pallas as pl
from jax.experimental.pallas import tpu as pltpu

EPS = 1e-4  # BatchNorm eps (BatchNorm2d and BatchNorm1d in the module)


def _round_up(x, m):
    return (x + m - 1) // m * m


def _vmem_specs(n):
    return [pl.BlockSpec(memory_space=pltpu.MemorySpace.VMEM) for _ in range(n)]


# ----------------------------------------------------------------------------
# Fused conv-block kernel:
#   Conv2d(3x3, pad=1, no bias) + BatchNorm2d(batch stats) + ELU + MaxPool2d(2)
#
#   slab_ref : (4, Kp, Nq) f32  im2col patches, one slab per 2x2 pool phase;
#                               K = 9*Cin zero-padded to Kp (multiple of 8),
#                               Nq = B*Ho*Wo (lane-dense spatial axis).
#   w_ref    : (Cout, Kp)  f32  conv weight as a matrix (tap-major columns).
#   o_ref    : (Cout, Nq)  f32  pooled, normalized, ELU'd output.
# ----------------------------------------------------------------------------
def _conv_block_kernel(slab_ref, w_ref, o_ref, *, nq):
    w = w_ref[...]
    # One MXU matmul per pool phase; all four results stay resident in VMEM.
    y0 = jnp.dot(w, slab_ref[0], preferred_element_type=jnp.float32)
    y1 = jnp.dot(w, slab_ref[1], preferred_element_type=jnp.float32)
    y2 = jnp.dot(w, slab_ref[2], preferred_element_type=jnp.float32)
    y3 = jnp.dot(w, slab_ref[3], preferred_element_type=jnp.float32)

    # BatchNorm2d batch statistics over all pre-pool activations of a channel
    # (B*H*W = 4*Nq values).  Lane reductions -> XLU.  Variance via
    # mean((y - mu)^2): numerically safe (no E[y^2]-mu^2 cancellation).
    n_tot = float(4 * nq)
    mu = jnp.sum(y0 + y1 + y2 + y3, axis=-1, keepdims=True) / n_tot
    var = (jnp.sum((y0 - mu) ** 2, axis=-1, keepdims=True)
           + jnp.sum((y1 - mu) ** 2, axis=-1, keepdims=True)
           + jnp.sum((y2 - mu) ** 2, axis=-1, keepdims=True)
           + jnp.sum((y3 - mu) ** 2, axis=-1, keepdims=True)) / n_tot
    inv = jax.lax.rsqrt(var + EPS)

    # BN normalization (inv > 0) and ELU are monotone increasing per channel,
    # so the 2x2 max-pool commutes with them: pool first, then normalize and
    # activate once (4x fewer transcendentals).
    pooled = jnp.maximum(jnp.maximum(y0, y1), jnp.maximum(y2, y3))
    yn = (pooled - mu) * inv
    # ELU (alpha=1).  exp(yn)-1 used instead of expm1 (expm1 lowering is not
    # guaranteed in Mosaic; precision difference is negligible here).
    o_ref[...] = jnp.where(yn > 0, yn, jnp.exp(yn) - 1.0)


# ----------------------------------------------------------------------------
# Fused mid kernel: Linear(no bias) + BatchNorm1d(batch stats, affine=False)
# ----------------------------------------------------------------------------
def _mid_kernel(z_ref, wt_ref, o_ref):
    y = jnp.dot(z_ref[...], wt_ref[...], preferred_element_type=jnp.float32)
    mu = jnp.mean(y, axis=0, keepdims=True)
    var = jnp.mean((y - mu) ** 2, axis=0, keepdims=True)
    o_ref[...] = (y - mu) * jax.lax.rsqrt(var + EPS)


# ----------------------------------------------------------------------------
# Wrappers (XLA layout glue around the fused kernels)
# ----------------------------------------------------------------------------
def _im2col_pool_phases(x_cbhw, kp):
    """(C,B,H,W) -> (4, Kp, B*Ho*Wo) phase-major 3x3/pad-1 patches.

    Phase (i, j) holds the patches of the conv outputs at pixels (2ho+i, 2wo+j),
    i.e. the four members of each 2x2 max-pool window, so the pool becomes an
    elementwise max inside the kernel and the output is lane-dense.
    """
    C, B, H, W = x_cbhw.shape
    Ho, Wo = H // 2, W // 2
    xp = jnp.pad(x_cbhw, ((0, 0), (0, 0), (1, 1), (1, 1)))
    phases = []
    for i in range(2):
        for j in range(2):
            taps = [xp[:, :, i + ki:i + ki + 2 * Ho:2, j + kj:j + kj + 2 * Wo:2]
                    for ki in range(3) for kj in range(3)]
            phases.append(
                jnp.concatenate(taps, axis=0).reshape(9 * C, B * Ho * Wo))
    slab = jnp.stack(phases, axis=0)
    if kp > 9 * C:
        slab = jnp.pad(slab, ((0, 0), (0, kp - 9 * C), (0, 0)))
    return slab


def conv_block(x_cbhw, w):
    """One ConvNet block (conv + BN + ELU + pool), fully fused in one kernel."""
    C, B, H, W = x_cbhw.shape
    cout = w.shape[0]
    Ho, Wo = H // 2, W // 2
    nq = B * Ho * Wo
    k = 9 * C
    kp = _round_up(k, 8)  # sublane-aligned contraction dim (no relayouts)

    # TODO(synk): the phase-im2col gather stays as (XLA-fused) layout glue; an
    # in-kernel shifted-tap accumulation would need stride-2 lane gathers that
    # Mosaic does not lower cleanly at this layout.
    slab = _im2col_pool_phases(x_cbhw, kp)
    wm = jnp.transpose(w, (0, 2, 3, 1)).reshape(cout, k)  # tap-major columns
    wm = jnp.pad(wm, ((0, 0), (0, kp - k)))

    y = pl.pallas_call(
        functools.partial(_conv_block_kernel, nq=nq),
        out_shape=jax.ShapeDtypeStruct((cout, nq), jnp.float32),
        in_specs=_vmem_specs(2),
        out_specs=pl.BlockSpec(memory_space=pltpu.MemorySpace.VMEM),
    )(slab, wm)
    return y.reshape(cout, B, Ho, Wo)


def mid_norm(z, w_mid):
    """NNNorm: Linear(in, out, bias=False) + BatchNorm1d(out, affine=False)."""
    return pl.pallas_call(
        _mid_kernel,
        out_shape=jax.ShapeDtypeStruct((z.shape[0], w_mid.shape[0]), jnp.float32),
        in_specs=_vmem_specs(2),
        out_specs=pl.BlockSpec(memory_space=pltpu.MemorySpace.VMEM),
    )(z, w_mid.T)


def enc_forward(params, x_nchw):
    B = x_nchw.shape[0]
    # Channel-major (C, B, H, W): the spatial axis is lane-dense everywhere.
    h = jnp.transpose(x_nchw, (1, 0, 2, 3))
    h = conv_block(h, params["enc1"])
    h = conv_block(h, params["enc2"])
    h = conv_block(h, params["enc3"])
    # torch: z = z.view(B, -1) flattens per-batch (C, H, W)
    z = jnp.transpose(h, (1, 0, 2, 3)).reshape(B, -1)
    # mid: Linear(64 -> 16, bias=False) + BatchNorm1d(16, affine=False)
    return mid_norm(z, params["mid"])


# ----------------------------------------------------------------------------
# Deterministic parameter init (xavier-uniform, matching the module shapes)
# ----------------------------------------------------------------------------
def xavier_uniform(key, shape):
    if len(shape) == 4:
        recept = shape[2] * shape[3]
        fan_in, fan_out = shape[1] * recept, shape[0] * recept
    else:
        fan_out, fan_in = shape
    bound = (6.0 / (fan_in + fan_out)) ** 0.5
    return jax.random.uniform(key, shape, jnp.float32, -bound, bound)


def make_params(key):
    ks = jax.random.split(key, 4)
    return {
        # Conv2d weights: (Cout, Cin, 3, 3)
        "enc1": xavier_uniform(ks[0], (8, 4, 3, 3)),
        "enc2": xavier_uniform(ks[1], (16, 8, 3, 3)),
        "enc3": xavier_uniform(ks[2], (16, 16, 3, 3)),
        # mid Linear weight: (out_features=16, in_features=64)
        "mid": xavier_uniform(ks[3], (16, 64)),
    }


if __name__ == "__main__":
    # Config implied by the forward pass:
    #   x (B, 4, 16, 16) -> 3x [conv+BN+ELU+pool] -> (B, 16, 2, 2)
    #   -> flatten 64 -> Linear+BN1d -> (B, 16)
    key = jax.random.PRNGKey(0)
    pkey, xkey = jax.random.split(key)
    params = make_params(pkey)
    x = jax.random.uniform(xkey, (8, 4, 16, 16), jnp.float32)

    fwd = jax.jit(enc_forward)
    z = fwd(params, x)
    jax.block_until_ready(z)

    assert z.shape == (8, 16), z.shape
    assert bool(jnp.all(jnp.isfinite(z))), "non-finite output"
    print("KERNEL_OK")
</pallas_src>

<mosaic_0001>
module attributes {stable_mosaic.version = 11 : i64} {
  func.func @_conv_block_kernel(%arg0: memref<4x40x512xf32, #tpu.memory_space<vmem>>, %arg1: memref<8x40xf32, #tpu.memory_space<vmem>>, %arg2: memref<8x512xf32, #tpu.memory_space<vmem>>) attributes {dimension_semantics = [], scalar_prefetch = 0 : i64, scratch_operands = 0 : i64, tpu.core_type = #tpu.core_type<tc>} {
    %c0 = arith.constant 0 : index
    %c0_0 = arith.constant 0 : index
    %0 = vector.load %arg1[%c0, %c0_0] : memref<8x40xf32, #tpu.memory_space<vmem>>, vector<8x40xf32>
    %c0_1 = arith.constant 0 : index
    %c0_2 = arith.constant 0 : index
    %c0_3 = arith.constant 0 : index
    %1 = vector.load %arg0[%c0_1, %c0_2, %c0_3] : memref<4x40x512xf32, #tpu.memory_space<vmem>>, vector<1x40x512xf32>
    %2 = vector.shape_cast %1 : vector<1x40x512xf32> to vector<40x512xf32>
    %cst = arith.constant dense<0.000000e+00> : vector<8x512xf32>
    %3 = tpu.matmul %0, %2, %cst {dimension_numbers = #tpu.dot_dimension_numbers<[1], [0], [0], [1], [0, 0, 1, 1], [], []>} : vector<8x40xf32>, vector<40x512xf32>, vector<8x512xf32> -> vector<8x512xf32>
    %c1 = arith.constant 1 : index
    %c0_4 = arith.constant 0 : index
    %c0_5 = arith.constant 0 : index
    %4 = vector.load %arg0[%c1, %c0_4, %c0_5] : memref<4x40x512xf32, #tpu.memory_space<vmem>>, vector<1x40x512xf32>
    %5 = vector.shape_cast %4 : vector<1x40x512xf32> to vector<40x512xf32>
    %cst_6 = arith.constant dense<0.000000e+00> : vector<8x512xf32>
    %6 = tpu.matmul %0, %5, %cst_6 {dimension_numbers = #tpu.dot_dimension_numbers<[1], [0], [0], [1], [0, 0, 1, 1], [], []>} : vector<8x40xf32>, vector<40x512xf32>, vector<8x512xf32> -> vector<8x512xf32>
    %c2 = arith.constant 2 : index
    %c0_7 = arith.constant 0 : index
    %c0_8 = arith.constant 0 : index
    %7 = vector.load %arg0[%c2, %c0_7, %c0_8] : memref<4x40x512xf32, #tpu.memory_space<vmem>>, vector<1x40x512xf32>
    %8 = vector.shape_cast %7 : vector<1x40x512xf32> to vector<40x512xf32>
    %cst_9 = arith.constant dense<0.000000e+00> : vector<8x512xf32>
    %9 = tpu.matmul %0, %8, %cst_9 {dimension_numbers = #tpu.dot_dimension_numbers<[1], [0], [0], [1], [0, 0, 1, 1], [], []>} : vector<8x40xf32>, vector<40x512xf32>, vector<8x512xf32> -> vector<8x512xf32>
    %c3 = arith.constant 3 : index
    %c0_10 = arith.constant 0 : index
    %c0_11 = arith.constant 0 : index
    %10 = vector.load %arg0[%c3, %c0_10, %c0_11] : memref<4x40x512xf32, #tpu.memory_space<vmem>>, vector<1x40x512xf32>
    %11 = vector.shape_cast %10 : vector<1x40x512xf32> to vector<40x512xf32>
    %cst_12 = arith.constant dense<0.000000e+00> : vector<8x512xf32>
    %12 = tpu.matmul %0, %11, %cst_12 {dimension_numbers = #tpu.dot_dimension_numbers<[1], [0], [0], [1], [0, 0, 1, 1], [], []>} : vector<8x40xf32>, vector<40x512xf32>, vector<8x512xf32> -> vector<8x512xf32>
    %13 = arith.addf %3, %6 : vector<8x512xf32>
    %14 = arith.addf %13, %9 : vector<8x512xf32>
    %15 = arith.addf %14, %12 : vector<8x512xf32>
    %cst_13 = arith.constant dense<0.000000e+00> : vector<8xf32>
    %16 = vector.multi_reduction <add>, %15, %cst_13 [1] : vector<8x512xf32> to vector<8xf32>
    %17 = vector.shape_cast %16 : vector<8xf32> to vector<8x1xf32>
    %cst_14 = arith.constant 2.048000e+03 : f32
    %18 = vector.broadcast %cst_14 : f32 to vector<8x1xf32>
    %19 = arith.divf %17, %18 : vector<8x1xf32>
    %20 = vector.broadcast %19 : vector<8x1xf32> to vector<8x512xf32>
    %21 = arith.subf %3, %20 : vector<8x512xf32>
    %22 = arith.mulf %21, %21 : vector<8x512xf32>
    %cst_15 = arith.constant dense<0.000000e+00> : vector<8xf32>
    %23 = vector.multi_reduction <add>, %22, %cst_15 [1] : vector<8x512xf32> to vector<8xf32>
    %24 = vector.shape_cast %23 : vector<8xf32> to vector<8x1xf32>
    %25 = vector.broadcast %19 : vector<8x1xf32> to vector<8x512xf32>
    %26 = arith.subf %6, %25 : vector<8x512xf32>
    %27 = arith.mulf %26, %26 : vector<8x512xf32>
    %cst_16 = arith.constant dense<0.000000e+00> : vector<8xf32>
    %28 = vector.multi_reduction <add>, %27, %cst_16 [1] : vector<8x512xf32> to vector<8xf32>
    %29 = vector.shape_cast %28 : vector<8xf32> to vector<8x1xf32>
    %30 = arith.addf %24, %29 : vector<8x1xf32>
    %31 = vector.broadcast %19 : vector<8x1xf32> to vector<8x512xf32>
    %32 = arith.subf %9, %31 : vector<8x512xf32>
    %33 = arith.mulf %32, %32 : vector<8x512xf32>
    %cst_17 = arith.constant dense<0.000000e+00> : vector<8xf32>
    %34 = vector.multi_reduction <add>, %33, %cst_17 [1] : vector<8x512xf32> to vector<8xf32>
    %35 = vector.shape_cast %34 : vector<8xf32> to vector<8x1xf32>
    %36 = arith.addf %30, %35 : vector<8x1xf32>
    %37 = vector.broadcast %19 : vector<8x1xf32> to vector<8x512xf32>
    %38 = arith.subf %12, %37 : vector<8x512xf32>
    %39 = arith.mulf %38, %38 : vector<8x512xf32>
    %cst_18 = arith.constant dense<0.000000e+00> : vector<8xf32>
    %40 = vector.multi_reduction <add>, %39, %cst_18 [1] : vector<8x512xf32> to vector<8xf32>
    %41 = vector.shape_cast %40 : vector<8xf32> to vector<8x1xf32>
    %42 = arith.addf %36, %41 : vector<8x1xf32>
    %cst_19 = arith.constant 2.048000e+03 : f32
    %43 = vector.broadcast %cst_19 : f32 to vector<8x1xf32>
    %44 = arith.divf %42, %43 : vector<8x1xf32>
    %cst_20 = arith.constant 9.99999974E-5 : f32
    %45 = vector.broadcast %cst_20 : f32 to vector<8x1xf32>
    %46 = arith.addf %44, %45 : vector<8x1xf32>
    %47 = math.rsqrt %46 : vector<8x1xf32>
    %48 = arith.maximumf %3, %6 : vector<8x512xf32>
    %49 = arith.maximumf %9, %12 : vector<8x512xf32>
    %50 = arith.maximumf %48, %49 : vector<8x512xf32>
    %51 = vector.broadcast %19 : vector<8x1xf32> to vector<8x512xf32>
    %52 = arith.subf %50, %51 : vector<8x512xf32>
    %53 = vector.broadcast %47 : vector<8x1xf32> to vector<8x512xf32>
    %54 = arith.mulf %52, %53 : vector<8x512xf32>
    %cst_21 = arith.constant 0.000000e+00 : f32
    %55 = vector.broadcast %cst_21 : f32 to vector<8x512xf32>
    %56 = arith.cmpf ogt, %54, %55 : vector<8x512xf32>
    %57 = math.exp %54 : vector<8x512xf32>
    %cst_22 = arith.constant 1.000000e+00 : f32
    %58 = vector.broadcast %cst_22 : f32 to vector<8x512xf32>
    %59 = arith.subf %57, %58 : vector<8x512xf32>
    %60 = arith.select %56, %54, %59 : vector<8x512xi1>, vector<8x512xf32>
    %c0_23 = arith.constant 0 : index
    %c0_24 = arith.constant 0 : index
    %61 = vector.load %arg2[%c0_23, %c0_24] : memref<8x512xf32, #tpu.memory_space<vmem>>, vector<8x512xf32>
    tpu.vector_store %arg2[%c0_23, %c0_24], %60 {strides = array<i32>} : memref<8x512xf32, #tpu.memory_space<vmem>>, vector<8x512xf32>,
    return
  }
}

module attributes {stable_mosaic.version = 11 : i64} {
  func.func @_conv_block_kernel(%arg0: memref<4x72x128xf32, #tpu.memory_space<vmem>>, %arg1: memref<16x72xf32, #tpu.memory_space<vmem>>, %arg2: memref<16x128xf32, #tpu.memory_space<vmem>>) attributes {dimension_semantics = [], scalar_prefetch = 0 : i64, scratch_operands = 0 : i64, tpu.core_type = #tpu.core_type<tc>} {
    %c0 = arith.constant 0 : index
    %c0_0 = arith.constant 0 : index
    %0 = vector.load %arg1[%c0, %c0_0] : memref<16x72xf32, #tpu.memory_space<vmem>>, vector<16x72xf32>
    %c0_1 = arith.constant 0 : index
    %c0_2 = arith.constant 0 : index
    %c0_3 = arith.constant 0 : index
    %1 = vector.load %arg0[%c0_1, %c0_2, %c0_3] : memref<4x72x128xf32, #tpu.memory_space<vmem>>, vector<1x72x128xf32>
    %2 = vector.shape_cast %1 : vector<1x72x128xf32> to vector<72x128xf32>
    %cst = arith.constant dense<0.000000e+00> : vector<16x128xf32>
    %3 = tpu.matmul %0, %2, %cst {dimension_numbers = #tpu.dot_dimension_numbers<[1], [0], [0], [1], [0, 0, 1, 1], [], []>} : vector<16x72xf32>, vector<72x128xf32>, vector<16x128xf32> -> vector<16x128xf32>
    %c1 = arith.constant 1 : index
    %c0_4 = arith.constant 0 : index
    %c0_5 = arith.constant 0 : index
    %4 = vector.load %arg0[%c1, %c0_4, %c0_5] : memref<4x72x128xf32, #tpu.memory_space<vmem>>, vector<1x72x128xf32>
    %5 = vector.shape_cast %4 : vector<1x72x128xf32> to vector<72x128xf32>
    %cst_6 = arith.constant dense<0.000000e+00> : vector<16x128xf32>
    %6 = tpu.matmul %0, %5, %cst_6 {dimension_numbers = #tpu.dot_dimension_numbers<[1], [0], [0], [1], [0, 0, 1, 1], [], []>} : vector<16x72xf32>, vector<72x128xf32>, vector<16x128xf32> -> vector<16x128xf32>
    %c2 = arith.constant 2 : index
    %c0_7 = arith.constant 0 : index
    %c0_8 = arith.constant 0 : index
    %7 = vector.load %arg0[%c2, %c0_7, %c0_8] : memref<4x72x128xf32, #tpu.memory_space<vmem>>, vector<1x72x128xf32>
    %8 = vector.shape_cast %7 : vector<1x72x128xf32> to vector<72x128xf32>
    %cst_9 = arith.constant dense<0.000000e+00> : vector<16x128xf32>
    %9 = tpu.matmul %0, %8, %cst_9 {dimension_numbers = #tpu.dot_dimension_numbers<[1], [0], [0], [1], [0, 0, 1, 1], [], []>} : vector<16x72xf32>, vector<72x128xf32>, vector<16x128xf32> -> vector<16x128xf32>
    %c3 = arith.constant 3 : index
    %c0_10 = arith.constant 0 : index
    %c0_11 = arith.constant 0 : index
    %10 = vector.load %arg0[%c3, %c0_10, %c0_11] : memref<4x72x128xf32, #tpu.memory_space<vmem>>, vector<1x72x128xf32>
    %11 = vector.shape_cast %10 : vector<1x72x128xf32> to vector<72x128xf32>
    %cst_12 = arith.constant dense<0.000000e+00> : vector<16x128xf32>
    %12 = tpu.matmul %0, %11, %cst_12 {dimension_numbers = #tpu.dot_dimension_numbers<[1], [0], [0], [1], [0, 0, 1, 1], [], []>} : vector<16x72xf32>, vector<72x128xf32>, vector<16x128xf32> -> vector<16x128xf32>
    %13 = arith.addf %3, %6 : vector<16x128xf32>
    %14 = arith.addf %13, %9 : vector<16x128xf32>
    %15 = arith.addf %14, %12 : vector<16x128xf32>
    %cst_13 = arith.constant dense<0.000000e+00> : vector<16xf32>
    %16 = vector.multi_reduction <add>, %15, %cst_13 [1] : vector<16x128xf32> to vector<16xf32>
    %17 = vector.shape_cast %16 : vector<16xf32> to vector<16x1xf32>
    %cst_14 = arith.constant 5.120000e+02 : f32
    %18 = vector.broadcast %cst_14 : f32 to vector<16x1xf32>
    %19 = arith.divf %17, %18 : vector<16x1xf32>
    %20 = vector.broadcast %19 : vector<16x1xf32> to vector<16x128xf32>
    %21 = arith.subf %3, %20 : vector<16x128xf32>
    %22 = arith.mulf %21, %21 : vector<16x128xf32>
    %cst_15 = arith.constant dense<0.000000e+00> : vector<16xf32>
    %23 = vector.multi_reduction <add>, %22, %cst_15 [1] : vector<16x128xf32> to vector<16xf32>
    %24 = vector.shape_cast %23 : vector<16xf32> to vector<16x1xf32>
    %25 = vector.broadcast %19 : vector<16x1xf32> to vector<16x128xf32>
    %26 = arith.subf %6, %25 : vector<16x128xf32>
    %27 = arith.mulf %26, %26 : vector<16x128xf32>
    %cst_16 = arith.constant dense<0.000000e+00> : vector<16xf32>
    %28 = vector.multi_reduction <add>, %27, %cst_16 [1] : vector<16x128xf32> to vector<16xf32>
    %29 = vector.shape_cast %28 : vector<16xf32> to vector<16x1xf32>
    %30 = arith.addf %24, %29 : vector<16x1xf32>
    %31 = vector.broadcast %19 : vector<16x1xf32> to vector<16x128xf32>
    %32 = arith.subf %9, %31 : vector<16x128xf32>
    %33 = arith.mulf %32, %32 : vector<16x128xf32>
    %cst_17 = arith.constant dense<0.000000e+00> : vector<16xf32>
    %34 = vector.multi_reduction <add>, %33, %cst_17 [1] : vector<16x128xf32> to vector<16xf32>
    %35 = vector.shape_cast %34 : vector<16xf32> to vector<16x1xf32>
    %36 = arith.addf %30, %35 : vector<16x1xf32>
    %37 = vector.broadcast %19 : vector<16x1xf32> to vector<16x128xf32>
    %38 = arith.subf %12, %37 : vector<16x128xf32>
    %39 = arith.mulf %38, %38 : vector<16x128xf32>
    %cst_18 = arith.constant dense<0.000000e+00> : vector<16xf32>
    %40 = vector.multi_reduction <add>, %39, %cst_18 [1] : vector<16x128xf32> to vector<16xf32>
    %41 = vector.shape_cast %40 : vector<16xf32> to vector<16x1xf32>
    %42 = arith.addf %36, %41 : vector<16x1xf32>
    %cst_19 = arith.constant 5.120000e+02 : f32
    %43 = vector.broadcast %cst_19 : f32 to vector<16x1xf32>
    %44 = arith.divf %42, %43 : vector<16x1xf32>
    %cst_20 = arith.constant 9.99999974E-5 : f32
    %45 = vector.broadcast %cst_20 : f32 to vector<16x1xf32>
    %46 = arith.addf %44, %45 : vector<16x1xf32>
    %47 = math.rsqrt %46 : vector<16x1xf32>
    %48 = arith.maximumf %3, %6 : vector<16x128xf32>
    %49 = arith.maximumf %9, %12 : vector<16x128xf32>
    %50 = arith.maximumf %48, %49 : vector<16x128xf32>
    %51 = vector.broadcast %19 : vector<16x1xf32> to vector<16x128xf32>
    %52 = arith.subf %50, %51 : vector<16x128xf32>
    %53 = vector.broadcast %47 : vector<16x1xf32> to vector<16x128xf32>
    %54 = arith.mulf %52, %53 : vector<16x128xf32>
    %cst_21 = arith.constant 0.000000e+00 : f32
    %55 = vector.broadcast %cst_21 : f32 to vector<16x128xf32>
    %56 = arith.cmpf ogt, %54, %55 : vector<16x128xf32>
    %57 = math.exp %54 : vector<16x128xf32>
    %cst_22 = arith.constant 1.000000e+00 : f32
    %58 = vector.broadcast %cst_22 : f32 to vector<16x128xf32>
    %59 = arith.subf %57, %58 : vector<16x128xf32>
    %60 = arith.select %56, %54, %59 : vector<16x128xi1>, vector<16x128xf32>
    %c0_23 = arith.constant 0 : index
    %c0_24 = arith.constant 0 : index
    %61 = vector.load %arg2[%c0_23, %c0_24] : memref<16x128xf32, #tpu.memory_space<vmem>>, vector<16x128xf32>
    tpu.vector_store %arg2[%c0_23, %c0_24], %60 {strides = array<i32>} : memref<16x128xf32, #tpu.memory_space<vmem>>, vector<16x128xf32>,
    return
  }
}

module attributes {stable_mosaic.version = 11 : i64} {
  func.func @_conv_block_kernel(%arg0: memref<4x144x32xf32, #tpu.memory_space<vmem>>, %arg1: memref<16x144xf32, #tpu.memory_space<vmem>>, %arg2: memref<16x32xf32, #tpu.memory_space<vmem>>) attributes {dimension_semantics = [], scalar_prefetch = 0 : i64, scratch_operands = 0 : i64, tpu.core_type = #tpu.core_type<tc>} {
    %c0 = arith.constant 0 : index
    %c0_0 = arith.constant 0 : index
    %0 = vector.load %arg1[%c0, %c0_0] : memref<16x144xf32, #tpu.memory_space<vmem>>, vector<16x144xf32>
    %c0_1 = arith.constant 0 : index
    %c0_2 = arith.constant 0 : index
    %c0_3 = arith.constant 0 : index
    %1 = vector.load %arg0[%c0_1, %c0_2, %c0_3] : memref<4x144x32xf32, #tpu.memory_space<vmem>>, vector<1x144x32xf32>
    %2 = vector.shape_cast %1 : vector<1x144x32xf32> to vector<144x32xf32>
    %cst = arith.constant dense<0.000000e+00> : vector<16x32xf32>
    %3 = tpu.matmul %0, %2, %cst {dimension_numbers = #tpu.dot_dimension_numbers<[1], [0], [0], [1], [0, 0, 1, 1], [], []>} : vector<16x144xf32>, vector<144x32xf32>, vector<16x32xf32> -> vector<16x32xf32>
    %c1 = arith.constant 1 : index
    %c0_4 = arith.constant 0 : index
    %c0_5 = arith.constant 0 : index
    %4 = vector.load %arg0[%c1, %c0_4, %c0_5] : memref<4x144x32xf32, #tpu.memory_space<vmem>>, vector<1x144x32xf32>
    %5 = vector.shape_cast %4 : vector<1x144x32xf32> to vector<144x32xf32>
    %cst_6 = arith.constant dense<0.000000e+00> : vector<16x32xf32>
    %6 = tpu.matmul %0, %5, %cst_6 {dimension_numbers = #tpu.dot_dimension_numbers<[1], [0], [0], [1], [0, 0, 1, 1], [], []>} : vector<16x144xf32>, vector<144x32xf32>, vector<16x32xf32> -> vector<16x32xf32>
    %c2 = arith.constant 2 : index
    %c0_7 = arith.constant 0 : index
    %c0_8 = arith.constant 0 : index
    %7 = vector.load %arg0[%c2, %c0_7, %c0_8] : memref<4x144x32xf32, #tpu.memory_space<vmem>>, vector<1x144x32xf32>
    %8 = vector.shape_cast %7 : vector<1x144x32xf32> to vector<144x32xf32>
    %cst_9 = arith.constant dense<0.000000e+00> : vector<16x32xf32>
    %9 = tpu.matmul %0, %8, %cst_9 {dimension_numbers = #tpu.dot_dimension_numbers<[1], [0], [0], [1], [0, 0, 1, 1], [], []>} : vector<16x144xf32>, vector<144x32xf32>, vector<16x32xf32> -> vector<16x32xf32>
    %c3 = arith.constant 3 : index
    %c0_10 = arith.constant 0 : index
    %c0_11 = arith.constant 0 : index
    %10 = vector.load %arg0[%c3, %c0_10, %c0_11] : memref<4x144x32xf32, #tpu.memory_space<vmem>>, vector<1x144x32xf32>
    %11 = vector.shape_cast %10 : vector<1x144x32xf32> to vector<144x32xf32>
    %cst_12 = arith.constant dense<0.000000e+00> : vector<16x32xf32>
    %12 = tpu.matmul %0, %11, %cst_12 {dimension_numbers = #tpu.dot_dimension_numbers<[1], [0], [0], [1], [0, 0, 1, 1], [], []>} : vector<16x144xf32>, vector<144x32xf32>, vector<16x32xf32> -> vector<16x32xf32>
    %13 = arith.addf %3, %6 : vector<16x32xf32>
    %14 = arith.addf %13, %9 : vector<16x32xf32>
    %15 = arith.addf %14, %12 : vector<16x32xf32>
    %cst_13 = arith.constant dense<0.000000e+00> : vector<16xf32>
    %16 = vector.multi_reduction <add>, %15, %cst_13 [1] : vector<16x32xf32> to vector<16xf32>
    %17 = vector.shape_cast %16 : vector<16xf32> to vector<16x1xf32>
    %cst_14 = arith.constant 1.280000e+02 : f32
    %18 = vector.broadcast %cst_14 : f32 to vector<16x1xf32>
    %19 = arith.divf %17, %18 : vector<16x1xf32>
    %20 = vector.broadcast %19 : vector<16x1xf32> to vector<16x32xf32>
    %21 = arith.subf %3, %20 : vector<16x32xf32>
    %22 = arith.mulf %21, %21 : vector<16x32xf32>
    %cst_15 = arith.constant dense<0.000000e+00> : vector<16xf32>
    %23 = vector.multi_reduction <add>, %22, %cst_15 [1] : vector<16x32xf32> to vector<16xf32>
    %24 = vector.shape_cast %23 : vector<16xf32> to vector<16x1xf32>
    %25 = vector.broadcast %19 : vector<16x1xf32> to vector<16x32xf32>
    %26 = arith.subf %6, %25 : vector<16x32xf32>
    %27 = arith.mulf %26, %26 : vector<16x32xf32>
    %cst_16 = arith.constant dense<0.000000e+00> : vector<16xf32>
    %28 = vector.multi_reduction <add>, %27, %cst_16 [1] : vector<16x32xf32> to vector<16xf32>
    %29 = vector.shape_cast %28 : vector<16xf32> to vector<16x1xf32>
    %30 = arith.addf %24, %29 : vector<16x1xf32>
    %31 = vector.broadcast %19 : vector<16x1xf32> to vector<16x32xf32>
    %32 = arith.subf %9, %31 : vector<16x32xf32>
    %33 = arith.mulf %32, %32 : vector<16x32xf32>
    %cst_17 = arith.constant dense<0.000000e+00> : vector<16xf32>
    %34 = vector.multi_reduction <add>, %33, %cst_17 [1] : vector<16x32xf32> to vector<16xf32>
    %35 = vector.shape_cast %34 : vector<16xf32> to vector<16x1xf32>
    %36 = arith.addf %30, %35 : vector<16x1xf32>
    %37 = vector.broadcast %19 : vector<16x1xf32> to vector<16x32xf32>
    %38 = arith.subf %12, %37 : vector<16x32xf32>
    %39 = arith.mulf %38, %38 : vector<16x32xf32>
    %cst_18 = arith.constant dense<0.000000e+00> : vector<16xf32>
    %40 = vector.multi_reduction <add>, %39, %cst_18 [1] : vector<16x32xf32> to vector<16xf32>
    %41 = vector.shape_cast %40 : vector<16xf32> to vector<16x1xf32>
    %42 = arith.addf %36, %41 : vector<16x1xf32>
    %cst_19 = arith.constant 1.280000e+02 : f32
    %43 = vector.broadcast %cst_19 : f32 to vector<16x1xf32>
    %44 = arith.divf %42, %43 : vector<16x1xf32>
    %cst_20 = arith.constant 9.99999974E-5 : f32
    %45 = vector.broadcast %cst_20 : f32 to vector<16x1xf32>
    %46 = arith.addf %44, %45 : vector<16x1xf32>
    %47 = math.rsqrt %46 : vector<16x1xf32>
    %48 = arith.maximumf %3, %6 : vector<16x32xf32>
    %49 = arith.maximumf %9, %12 : vector<16x32xf32>
    %50 = arith.maximumf %48, %49 : vector<16x32xf32>
    %51 = vector.broadcast %19 : vector<16x1xf32> to vector<16x32xf32>
    %52 = arith.subf %50, %51 : vector<16x32xf32>
    %53 = vector.broadcast %47 : vector<16x1xf32> to vector<16x32xf32>
    %54 = arith.mulf %52, %53 : vector<16x32xf32>
    %cst_21 = arith.constant 0.000000e+00 : f32
    %55 = vector.broadcast %cst_21 : f32 to vector<16x32xf32>
    %56 = arith.cmpf ogt, %54, %55 : vector<16x32xf32>
    %57 = math.exp %54 : vector<16x32xf32>
    %cst_22 = arith.constant 1.000000e+00 : f32
    %58 = vector.broadcast %cst_22 : f32 to vector<16x32xf32>
    %59 = arith.subf %57, %58 : vector<16x32xf32>
    %60 = arith.select %56, %54, %59 : vector<16x32xi1>, vector<16x32xf32>
    %c0_23 = arith.constant 0 : index
    %c0_24 = arith.constant 0 : index
    %61 = vector.load %arg2[%c0_23, %c0_24] : memref<16x32xf32, #tpu.memory_space<vmem>>, vector<16x32xf32>
    tpu.vector_store %arg2[%c0_23, %c0_24], %60 {strides = array<i32>} : memref<16x32xf32, #tpu.memory_space<vmem>>, vector<16x32xf32>,
    return
  }
}

module attributes {stable_mosaic.version = 11 : i64} {
  func.func @_mid_kernel(%arg0: memref<8x64xf32, #tpu.memory_space<vmem>>, %arg1: memref<64x16xf32, #tpu.memory_space<vmem>>, %arg2: memref<8x16xf32, #tpu.memory_space<vmem>>) attributes {dimension_semantics = [], scalar_prefetch = 0 : i64, scratch_operands = 0 : i64, tpu.core_type = #tpu.core_type<tc>} {
    %c0 = arith.constant 0 : index
    %c0_0 = arith.constant 0 : index
    %0 = vector.load %arg0[%c0, %c0_0] : memref<8x64xf32, #tpu.memory_space<vmem>>, vector<8x64xf32>
    %c0_1 = arith.constant 0 : index
    %c0_2 = arith.constant 0 : index
    %1 = vector.load %arg1[%c0_1, %c0_2] : memref<64x16xf32, #tpu.memory_space<vmem>>, vector<64x16xf32>
    %cst = arith.constant dense<0.000000e+00> : vector<8x16xf32>
    %2 = tpu.matmul %0, %1, %cst {dimension_numbers = #tpu.dot_dimension_numbers<[1], [0], [0], [1], [0, 0, 1, 1], [], []>} : vector<8x64xf32>, vector<64x16xf32>, vector<8x16xf32> -> vector<8x16xf32>
    %cst_3 = arith.constant dense<0.000000e+00> : vector<16xf32>
    %3 = vector.multi_reduction <add>, %2, %cst_3 [0] : vector<8x16xf32> to vector<16xf32>
    %4 = vector.shape_cast %3 : vector<16xf32> to vector<1x16xf32>
    %cst_4 = arith.constant 8.000000e+00 : f32
    %5 = vector.broadcast %cst_4 : f32 to vector<1x16xf32>
    %6 = arith.divf %4, %5 : vector<1x16xf32>
    %7 = vector.broadcast %6 : vector<1x16xf32> to vector<8x16xf32>
    %8 = arith.subf %2, %7 : vector<8x16xf32>
    %9 = arith.mulf %8, %8 : vector<8x16xf32>
    %cst_5 = arith.constant dense<0.000000e+00> : vector<16xf32>
    %10 = vector.multi_reduction <add>, %9, %cst_5 [0] : vector<8x16xf32> to vector<16xf32>
    %11 = vector.shape_cast %10 : vector<16xf32> to vector<1x16xf32>
    %cst_6 = arith.constant 8.000000e+00 : f32
    %12 = vector.broadcast %cst_6 : f32 to vector<1x16xf32>
    %13 = arith.divf %11, %12 : vector<1x16xf32>
    %14 = vector.broadcast %6 : vector<1x16xf32> to vector<8x16xf32>
    %15 = arith.subf %2, %14 : vector<8x16xf32>
    %cst_7 = arith.constant 9.99999974E-5 : f32
    %16 = vector.broadcast %cst_7 : f32 to vector<1x16xf32>
    %17 = arith.addf %13, %16 : vector<1x16xf32>
    %18 = math.rsqrt %17 : vector<1x16xf32>
    %19 = vector.broadcast %18 : vector<1x16xf32> to vector<8x16xf32>
    %20 = arith.mulf %15, %19 : vector<8x16xf32>
    %c0_8 = arith.constant 0 : index
    %c0_9 = arith.constant 0 : index
    %21 = vector.load %arg2[%c0_8, %c0_9] : memref<8x16xf32, #tpu.memory_space<vmem>>, vector<8x16xf32>
    tpu.vector_store %arg2[%c0_8, %c0_9], %20 {strides = array<i32>} : memref<8x16xf32, #tpu.memory_space<vmem>>, vector<8x16xf32>,
    return
  }
}

</mosaic_0001>

<llo_original>
// kernel: enc_forward.4
$region0: #{enc_forward.4}
  #allocation0 [shape = 'u32[]', space=smem, size = 0x4, offset = 0x4, fixed_abs, tag = 'smem constant byte address 0x4 - core index']
  #allocation1 [shape = 'u32[144,128]{1,0:T(1,128)}', space=vmem, size = 0x12000, scoped, tag = 'internal scratch']
  %s0 = inlined_call_operand.vmem [shape: f32[4,40,512], index: 0, kind: input, shape index: {}]
  %s1 = inlined_call_operand.vmem [shape: f32[8,40], index: 1, kind: input, shape index: {}]
  %s2 = inlined_call_operand.vmem [shape: f32[8,512], index: 2, kind: output, shape index: {}]
  %s3 = sld [smem:[#allocation0]]
  $region18: #{enc_forward.4} parent=0
    _
  %s5 = ssub.s32 1, %s3
  %s6 = scalar_select 0, %s5, %s3
  // Predicated region
  $region2: #{enc_forward.4} parent=0 // pred_check
    _
  $region3: #{enc_forward.4} parent=0 // pred_check_branch
    %8 = sbr.rel (0) target = $region5
  $region4: #{enc_forward.4} parent=0 // pred_region
    _
  $region5: #{enc_forward.4} parent=0 // pred_fallthru
    _
  // Predicated region
  $region6: #{enc_forward.4} parent=0 // pred_check
    _
  $region7: #{enc_forward.4} parent=0 // pred_check_branch
    %10 = sbr.rel (0) target = $region9
  $region8: #{enc_forward.4} parent=0 // pred_region
    _
  $region9: #{enc_forward.4} parent=0 // pred_fallthru
    _
  %v11 = vld [vmem:[%s1] sm:$0xff]
  %v12 = vld [vmem:[%s0] sm:$0xff]
  %v13 = vld [vmem:[%s0 + $0x8] sm:$0xff]
  %v14 = vld [vmem:[%s0 + $0x10] sm:$0xff]
  %v15 = vld [vmem:[%s0 + $0x18] sm:$0xff]
  %v16 = vld [vmem:[%s0 + $0x20] sm:$0xff]
  %v17 = vld [vmem:[%s0 + $0x28] sm:$0xff]
  %v18 = vld [vmem:[%s0 + $0x30] sm:$0xff]
  %v19 = vld [vmem:[%s0 + $0x38] sm:$0xff]
  %v20 = vld [vmem:[%s0 + $0x40] sm:$0xff]
  %v21 = vld [vmem:[%s0 + $0x48] sm:$0xff]
  %v22 = vld [vmem:[%s0 + $0x50] sm:$0xff]
  %v23 = vld [vmem:[%s0 + $0x58] sm:$0xff]
  %v24 = vld [vmem:[%s0 + $0x60] sm:$0xff]
  %v25 = vld [vmem:[%s0 + $0x68] sm:$0xff]
  %v26 = vld [vmem:[%s0 + $0x70] sm:$0xff]
  %v27 = vld [vmem:[%s0 + $0x78] sm:$0xff]
  %v28 = vld [vmem:[%s0 + $0x80] sm:$0xff]
  %v29 = vld [vmem:[%s0 + $0x88] sm:$0xff]
  %v30 = vld [vmem:[%s0 + $0x90] sm:$0xff]
  %v31 = vld [vmem:[%s0 + $0x98] sm:$0xff]
  %vm32 = vcmask 326656
  %v34 = vsel %vm32, %v11, 0
  %36 = vmatprep.subr.mxu0 0.0
  %37 = vmatpush1.msra.mxu0 0.0
  %38 = vmatprep.subr.mxu0 0.0
  %39 = vmatpush1.msra.mxu0 0.0
  %40 = vmatprep.subr.mxu0 0.0
  %41 = vmatpush1.msra.mxu0 0.0
  %42 = vmatprep.subr.mxu0 0.0
  %43 = vmatpush1.msra.mxu0 0.0
  %44 = vmatprep.subr.mxu0 0.0
  %45 = vmatpush1.msra.mxu0 0.0
  %46 = vmatprep.subr.mxu0 0.0
  %47 = vmatpush1.msra.mxu0 0.0
  %48 = vmatprep.subr.mxu0 0.0
  %49 = vmatpush1.msra.mxu0 0.0
  %50 = vmatprep.subr.mxu0 0.0
  %51 = vmatpush1.msra.mxu0 0.0
  %52 = vmatprep.subr.mxu0 0.0
  %53 = vmatpush1.msra.mxu0 0.0
  %54 = vmatprep.subr.mxu0 0.0
  %55 = vmatpush1.msra.mxu0 0.0
  %56 = vmatprep.subr.mxu0 0.0
  %57 = vmatpush1.msra.mxu0 0.0
  %58 = vmatprep.subr.mxu0 %v29
  %59 = vmatpush1.msra.mxu0 %v28
  %60 = vmatprep.subr.mxu0 %v25
  %61 = vmatpush1.msra.mxu0 %v24
  %62 = vmatprep.subr.mxu0 %v21
  %63 = vmatpush1.msra.mxu0 %v20
  %64 = vmatprep.subr.mxu0 %v17
  %65 = vmatpush1.msra.mxu0 %v16
  %66 = vmatprep.subr.mxu0 %v13
  %67 = vmatpush1.msra.mxu0 %v12
  %68 = vmatprep.subr.mxu0 0.0
  %69 = vmatpush2.msra.mxu0 0.0
  %70 = vmatprep.subr.mxu0 0.0
  %71 = vmatpush2.msra.mxu0 0.0
  %72 = vmatprep.subr.mxu0 0.0
  %73 = vmatpush2.msra.mxu0 0.0
  %74 = vmatprep.subr.mxu0 0.0
  %75 = vmatpush2.msra.mxu0 0.0
  %76 = vmatprep.subr.mxu0 0.0
  %77 = vmatpush2.msra.mxu0 0.0
  %78 = vmatprep.subr.mxu0 0.0
  %79 = vmatpush2.msra.mxu0 0.0
  %80 = vmatprep.subr.mxu0 0.0
  %81 = vmatpush2.msra.mxu0 0.0
  %82 = vmatprep.subr.mxu0 0.0
  %83 = vmatpush2.msra.mxu0 0.0
  %84 = vmatprep.subr.mxu0 0.0
  %85 = vmatpush2.msra.mxu0 0.0
  %86 = vmatprep.subr.mxu0 0.0
  %87 = vmatpush2.msra.mxu0 0.0
  %88 = vmatprep.subr.mxu0 0.0
  %89 = vmatpush2.msra.mxu0 0.0
  %90 = vmatprep.subr.mxu0 0.0
  %91 = vmatpush2.msra.mxu0 0.0
  %92 = vmatprep.subr.mxu0 0.0
  %93 = vmatpush2.msra.mxu0 0.0
  %94 = vmatprep.subr.mxu0 0.0
  %95 = vmatpush2.msra.mxu0 0.0
  %96 = vmatprep.subr.mxu0 0.0
  %97 = vmatpush2.msra.mxu0 0.0
  %98 = vmatprep.subr.mxu0 0.0
  %99 = vmatpush2.msra.mxu0 0.0
  %100 = vmatprep.mubr.f32.mxu0 0.0
  %101 = vmatmul.mubr.f32.gmra.mxu0 %v34
  %v102 = vpop.f32.mrf.mxu0
  %v103 = vadd.f32 0.0, %v102
  %v104 = vpop.f32.mrf.mxu0
  %v105 = vadd.f32 0.0, %v104
  %106 = vdwg.mxu0
  %107 = vmatprep.subr.mxu0 0.0
  %108 = vmatpush1.msra.mxu0 0.0
  %109 = vmatprep.subr.mxu0 0.0
  %110 = vmatpush1.msra.mxu0 0.0
  %111 = vmatprep.subr.mxu0 0.0
  %112 = vmatpush1.msra.mxu0 0.0
  %113 = vmatprep.subr.mxu0 0.0
  %114 = vmatpush1.msra.mxu0 0.0
  %115 = vmatprep.subr.mxu0 0.0
  %116 = vmatpush1.msra.mxu0 0.0
  %117 = vmatprep.subr.mxu0 0.0
  %118 = vmatpush1.msra.mxu0 0.0
  %119 = vmatprep.subr.mxu0 0.0
  %120 = vmatpush1.msra.mxu0 0.0
  %121 = vmatprep.subr.mxu0 0.0
  %122 = vmatpush1.msra.mxu0 0.0
  %123 = vmatprep.subr.mxu0 0.0
  %124 = vmatpush1.msra.mxu0 0.0
  %125 = vmatprep.subr.mxu0 0.0
  %126 = vmatpush1.msra.mxu0 0.0
  %127 = vmatprep.subr.mxu0 0.0
  %128 = vmatpush1.msra.mxu0 0.0
  %129 = vmatprep.subr.mxu0 %v31
  %130 = vmatpush1.msra.mxu0 %v30
  %131 = vmatprep.subr.mxu0 %v27
  %132 = vmatpush1.msra.mxu0 %v26
  %133 = vmatprep.subr.mxu0 %v23
  %134 = vmatpush1.msra.mxu0 %v22
  %135 = vmatprep.subr.mxu0 %v19
  %136 = vmatpush1.msra.mxu0 %v18
  %137 = vmatprep.subr.mxu0 %v15
  %138 = vmatpush1.msra.mxu0 %v14
  %139 = vmatprep.subr.mxu0 0.0
  %140 = vmatpush2.msra.mxu0 0.0
  %141 = vmatprep.subr.mxu0 0.0
  %142 = vmatpush2.msra.mxu0 0.0
  %143 = vmatprep.subr.mxu0 0.0
  %144 = vmatpush2.msra.mxu0 0.0
  %145 = vmatprep.subr.mxu0 0.0
  %146 = vmatpush2.msra.mxu0 0.0
  %147 = vmatprep.subr.mxu0 0.0
  %148 = vmatpush2.msra.mxu0 0.0
  %149 = vmatprep.subr.mxu0 0.0
  %150 = vmatpush2.msra.mxu0 0.0
  %151 = vmatprep.subr.mxu0 0.0
  %152 = vmatpush2.msra.mxu0 0.0
  %153 = vmatprep.subr.mxu0 0.0
  %154 = vmatpush2.msra.mxu0 0.0
  %155 = vmatprep.subr.mxu0 0.0
  %156 = vmatpush2.msra.mxu0 0.0
  %157 = vmatprep.subr.mxu0 0.0
  %158 = vmatpush2.msra.mxu0 0.0
  %159 = vmatprep.subr.mxu0 0.0
  %160 = vmatpush2.msra.mxu0 0.0
  %161 = vmatprep.subr.mxu0 0.0
  %162 = vmatpush2.msra.mxu0 0.0
  %163 = vmatprep.subr.mxu0 0.0
  %164 = vmatpush2.msra.mxu0 0.0
  %165 = vmatprep.subr.mxu0 0.0
  %166 = vmatpush2.msra.mxu0 0.0
  %167 = vmatprep.subr.mxu0 0.0
  %168 = vmatpush2.msra.mxu0 0.0
  %169 = vmatprep.subr.mxu0 0.0
  %170 = vmatpush2.msra.mxu0 0.0
  %171 = vmatprep.mubr.f32.mxu0 0.0
  %172 = vmatmul.mubr.f32.gmra.mxu0 %v34
  %v173 = vpop.f32.mrf.mxu0
  %v174 = vadd.f32 0.0, %v173
  %v175 = vpop.f32.mrf.mxu0
  %v176 = vadd.f32 0.0, %v175
  %177 = vdwg.mxu0
  %s178 = scalar_lea.vmem %s0, 160
  %v179 = vld [vmem:[%s178] sm:$0xff]
  %v180 = vld [vmem:[%s178 + $0x8] sm:$0xff]
  %v181 = vld [vmem:[%s178 + $0x10] sm:$0xff]
  %v182 = vld [vmem:[%s178 + $0x18] sm:$0xff]
  %v183 = vld [vmem:[%s178 + $0x20] sm:$0xff]
  %v184 = vld [vmem:[%s178 + $0x28] sm:$0xff]
  %v185 = vld [vmem:[%s178 + $0x30] sm:$0xff]
  %v186 = vld [vmem:[%s178 + $0x38] sm:$0xff]
  %v187 = vld [vmem:[%s178 + $0x40] sm:$0xff]
  %v188 = vld [vmem:[%s178 + $0x48] sm:$0xff]
  %v189 = vld [vmem:[%s178 + $0x50] sm:$0xff]
  %v190 = vld [vmem:[%s178 + $0x58] sm:$0xff]
  %v191 = vld [vmem:[%s178 + $0x60] sm:$0xff]
  %v192 = vld [vmem:[%s178 + $0x68] sm:$0xff]
  %v193 = vld [vmem:[%s178 + $0x70] sm:$0xff]
  %v194 = vld [vmem:[%s178 + $0x78] sm:$0xff]
  %v195 = vld [vmem:[%s178 + $0x80] sm:$0xff]
  %v196 = vld [vmem:[%s178 + $0x88] sm:$0xff]
  %v197 = vld [vmem:[%s178 + $0x90] sm:$0xff]
  %v198 = vld [vmem:[%s178 + $0x98] sm:$0xff]
  %199 = vmatprep.subr.mxu0 0.0
  %200 = vmatpush1.msra.mxu0 0.0
  %201 = vmatprep.subr.mxu0 0.0
  %202 = vmatpush1.msra.mxu0 0.0
  %203 = vmatprep.subr.mxu0 0.0
  %204 = vmatpush1.msra.mxu0 0.0
  %205 = vmatprep.subr.mxu0 0.0
  %206 = vmatpush1.msra.mxu0 0.0
  %207 = vmatprep.subr.mxu0 0.0
  %208 = vmatpush1.msra.mxu0 0.0
  %209 = vmatprep.subr.mxu0 0.0
  %210 = vmatpush1.msra.mxu0 0.0
  %211 = vmatprep.subr.mxu0 0.0
  %212 = vmatpush1.msra.mxu0 0.0
  %213 = vmatprep.subr.mxu0 0.0
  %214 = vmatpush1.msra.mxu0 0.0
  %215 = vmatprep.subr.mxu0 0.0
  %216 = vmatpush1.msra.mxu0 0.0
  %217 = vmatprep.subr.mxu0 0.0
  %218 = vmatpush1.msra.mxu0 0.0
  %219 = vmatprep.subr.mxu0 0.0
  %220 = vmatpush1.msra.mxu0 0.0
  %221 = vmatprep.subr.mxu0 %v196
  %222 = vmatpush1.msra.mxu0 %v195
  %223 = vmatprep.subr.mxu0 %v192
  %224 = vmatpush1.msra.mxu0 %v191
  %225 = vmatprep.subr.mxu0 %v188
  %226 = vmatpush1.msra.mxu0 %v187
  %227 = vmatprep.subr.mxu0 %v184
  %228 = vmatpush1.msra.mxu0 %v183
  %229 = vmatprep.subr.mxu0 %v180
  %230 = vmatpush1.msra.mxu0 %v179
  %231 = vmatprep.subr.mxu0 0.0
  %232 = vmatpush2.msra.mxu0 0.0
  %233 = vmatprep.subr.mxu0 0.0
  %234 = vmatpush2.msra.mxu0 0.0
  %235 = vmatprep.subr.mxu0 0.0
  %236 = vmatpush2.msra.mxu0 0.0
  %237 = vmatprep.subr.mxu0 0.0
  %238 = vmatpush2.msra.mxu0 0.0
  %239 = vmatprep.subr.mxu0 0.0
  %240 = vmatpush2.msra.mxu0 0.0
  %241 = vmatprep.subr.mxu0 0.0
  %242 = vmatpush2.msra.mxu0 0.0
  %243 = vmatprep.subr.mxu0 0.0
  %244 = vmatpush2.msra.mxu0 0.0
  %245 = vmatprep.subr.mxu0 0.0
  %246 = vmatpush2.msra.mxu0 0.0
  %247 = vmatprep.subr.mxu0 0.0
  %248 = vmatpush2.msra.mxu0 0.0
  %249 = vmatprep.subr.mxu0 0.0
  %250 = vmatpush2.msra.mxu0 0.0
  %251 = vmatprep.subr.mxu0 0.0
  %252 = vmatpush2.msra.mxu0 0.0
  %253 = vmatprep.subr.mxu0 0.0
  %254 = vmatpush2.msra.mxu0 0.0
  %255 = vmatprep.subr.mxu0 0.0
  %256 = vmatpush2.msra.mxu0 0.0
  %257 = vmatprep.subr.mxu0 0.0
  %258 = vmatpush2.msra.mxu0 0.0
  %259 = vmatprep.subr.mxu0 0.0
  %260 = vmatpush2.msra.mxu0 0.0
  %261 = vmatprep.subr.mxu0 0.0
  %262 = vmatpush2.msra.mxu0 0.0
  %263 = vmatprep.mubr.f32.mxu0 0.0
  %264 = vmatmul.mubr.f32.gmra.mxu0 %v34
  %v265 = vpop.f32.mrf.mxu0
  %v266 = vadd.f32 0.0, %v265
  %v267 = vpop.f32.mrf.mxu0
  %v268 = vadd.f32 0.0, %v267
  %269 = vdwg.mxu0
  %270 = vmatprep.subr.mxu0 0.0
  %271 = vmatpush1.msra.mxu0 0.0
  %272 = vmatprep.subr.mxu0 0.0
  %273 = vmatpush1.msra.mxu0 0.0
  %274 = vmatprep.subr.mxu0 0.0
  %275 = vmatpush1.msra.mxu0 0.0
  %276 = vmatprep.subr.mxu0 0.0
  %277 = vmatpush1.msra.mxu0 0.0
  %278 = vmatprep.subr.mxu0 0.0
  %279 = vmatpush1.msra.mxu0 0.0
  %280 = vmatprep.subr.mxu0 0.0
  %281 = vmatpush1.msra.mxu0 0.0
  %282 = vmatprep.subr.mxu0 0.0
  %283 = vmatpush1.msra.mxu0 0.0
  %284 = vmatprep.subr.mxu0 0.0
  %285 = vmatpush1.msra.mxu0 0.0
  %286 = vmatprep.subr.mxu0 0.0
  %287 = vmatpush1.msra.mxu0 0.0
  %288 = vmatprep.subr.mxu0 0.0
  %289 = vmatpush1.msra.mxu0 0.0
  %290 = vmatprep.subr.mxu0 0.0
  %291 = vmatpush1.msra.mxu0 0.0
  %292 = vmatprep.subr.mxu0 %v198
  %293 = vmatpush1.msra.mxu0 %v197
  %294 = vmatprep.subr.mxu0 %v194
  %295 = vmatpush1.msra.mxu0 %v193
  %296 = vmatprep.subr.mxu0 %v190
  %297 = vmatpush1.msra.mxu0 %v189
  %298 = vmatprep.subr.mxu0 %v186
  %299 = vmatpush1.msra.mxu0 %v185
  %300 = vmatprep.subr.mxu0 %v182
  %301 = vmatpush1.msra.mxu0 %v181
  %302 = vmatprep.subr.mxu0 0.0
  %303 = vmatpush2.msra.mxu0 0.0
  %304 = vmatprep.subr.mxu0 0.0
  %305 = vmatpush2.msra.mxu0 0.0
  %306 = vmatprep.subr.mxu0 0.0
  %307 = vmatpush2.msra.mxu0 0.0
  %308 = vmatprep.subr.mxu0 0.0
  %309 = vmatpush2.msra.mxu0 0.0
  %310 = vmatprep.subr.mxu0 0.0
  %311 = vmatpush2.msra.mxu0 0.0
  %312 = vmatprep.subr.mxu0 0.0
  %313 = vmatpush2.msra.mxu0 0.0
  %314 = vmatprep.subr.mxu0 0.0
  %315 = vmatpush2.msra.mxu0 0.0
  %316 = vmatprep.subr.mxu0 0.0
  %317 = vmatpush2.msra.mxu0 0.0
  %318 = vmatprep.subr.mxu0 0.0
  %319 = vmatpush2.msra.mxu0 0.0
  %320 = vmatprep.subr.mxu0 0.0
  %321 = vmatpush2.msra.mxu0 0.0
  %322 = vmatprep.subr.mxu0 0.0
  %323 = vmatpush2.msra.mxu0 0.0
  %324 = vmatprep.subr.mxu0 0.0
  %325 = vmatpush2.msra.mxu0 0.0
  %326 = vmatprep.subr.mxu0 0.0
  %327 = vmatpush2.msra.mxu0 0.0
  %328 = vmatprep.subr.mxu0 0.0
  %329 = vmatpush2.msra.mxu0 0.0
  %330 = vmatprep.subr.mxu0 0.0
  %331 = vmatpush2.msra.mxu0 0.0
  %332 = vmatprep.subr.mxu0 0.0
  %333 = vmatpush2.msra.mxu0 0.0
  %334 = vmatprep.mubr.f32.mxu0 0.0
  %335 = vmatmul.mubr.f32.gmra.mxu0 %v34
  %v336 = vpop.f32.mrf.mxu0
  %v337 = vadd.f32 0.0, %v336
  %v338 = vpop.f32.mrf.mxu0
  %v339 = vadd.f32 0.0, %v338
  %340 = vdwg.mxu0
  %s341 = scalar_lea.vmem %s0, 320
  %v342 = vld [vmem:[%s341] sm:$0xff]
  %v343 = vld [vmem:[%s341 + $0x8] sm:$0xff]
  %v344 = vld [vmem:[%s341 + $0x10] sm:$0xff]
  %v345 = vld [vmem:[%s341 + $0x18] sm:$0xff]
  %v346 = vld [vmem:[%s341 + $0x20] sm:$0xff]
  %v347 = vld [vmem:[%s341 + $0x28] sm:$0xff]
  %v348 = vld [vmem:[%s341 + $0x30] sm:$0xff]
  %v349 = vld [vmem:[%s341 + $0x38] sm:$0xff]
  %v350 = vld [vmem:[%s341 + $0x40] sm:$0xff]
  %v351 = vld [vmem:[%s341 + $0x48] sm:$0xff]
  %v352 = vld [vmem:[%s341 + $0x50] sm:$0xff]
  %v353 = vld [vmem:[%s341 + $0x58] sm:$0xff]
  %v354 = vld [vmem:[%s341 + $0x60] sm:$0xff]
  %v355 = vld [vmem:[%s341 + $0x68] sm:$0xff]
  %v356 = vld [vmem:[%s341 + $0x70] sm:$0xff]
  %v357 = vld [vmem:[%s341 + $0x78] sm:$0xff]
  %v358 = vld [vmem:[%s341 + $0x80] sm:$0xff]
  %v359 = vld [vmem:[%s341 + $0x88] sm:$0xff]
  %v360 = vld [vmem:[%s341 + $0x90] sm:$0xff]
  %v361 = vld [vmem:[%s341 + $0x98] sm:$0xff]
  %362 = vmatprep.subr.mxu0 0.0
  %363 = vmatpush1.msra.mxu0 0.0
  %364 = vmatprep.subr.mxu0 0.0
  %365 = vmatpush1.msra.mxu0 0.0
  %366 = vmatprep.subr.mxu0 0.0
  %367 = vmatpush1.msra.mxu0 0.0
  %368 = vmatprep.subr.mxu0 0.0
  %369 = vmatpush1.msra.mxu0 0.0
  %370 = vmatprep.subr.mxu0 0.0
  %371 = vmatpush1.msra.mxu0 0.0
  %372 = vmatprep.subr.mxu0 0.0
  %373 = vmatpush1.msra.mxu0 0.0
  %374 = vmatprep.subr.mxu0 0.0
  %375 = vmatpush1.msra.mxu0 0.0
  %376 = vmatprep.subr.mxu0 0.0
  %377 = vmatpush1.msra.mxu0 0.0
  %378 = vmatprep.subr.mxu0 0.0
  %379 = vmatpush1.msra.mxu0 0.0
  %380 = vmatprep.subr.mxu0 0.0
  %381 = vmatpush1.msra.mxu0 0.0
  %382 = vmatprep.subr.mxu0 0.0
  %383 = vmatpush1.msra.mxu0 0.0
  %384 = vmatprep.subr.mxu0 %v359
  %385 = vmatpush1.msra.mxu0 %v358
  %386 = vmatprep.subr.mxu0 %v355
  %387 = vmatpush1.msra.mxu0 %v354
  %388 = vmatprep.subr.mxu0 %v351
  %389 = vmatpush1.msra.mxu0 %v350
  %390 = vmatprep.subr.mxu0 %v347
  %391 = vmatpush1.msra.mxu0 %v346
  %392 = vmatprep.subr.mxu0 %v343
  %393 = vmatpush1.msra.mxu0 %v342
  %394 = vmatprep.subr.mxu0 0.0
  %395 = vmatpush2.msra.mxu0 0.0
  %396 = vmatprep.subr.mxu0 0.0
  %397 = vmatpush2.msra.mxu0 0.0
  %398 = vmatprep.subr.mxu0 0.0
  %399 = vmatpush2.msra.mxu0 0.0
  %400 = vmatprep.subr.mxu0 0.0
  %401 = vmatpush2.msra.mxu0 0.0
  %402 = vmatprep.subr.mxu0 0.0
  %403 = vmatpush2.msra.mxu0 0.0
  %404 = vmatprep.subr.mxu0 0.0
  %405 = vmatpush2.msra.mxu0 0.0
  %406 = vmatprep.subr.mxu0 0.0
  %407 = vmatpush2.msra.mxu0 0.0
  %408 = vmatprep.subr.mxu0 0.0
  %409 = vmatpush2.msra.mxu0 0.0
  %410 = vmatprep.subr.mxu0 0.0
  %411 = vmatpush2.msra.mxu0 0.0
  %412 = vmatprep.subr.mxu0 0.0
  %413 = vmatpush2.msra.mxu0 0.0
  %414 = vmatprep.subr.mxu0 0.0
  %415 = vmatpush2.msra.mxu0 0.0
  %416 = vmatprep.subr.mxu0 0.0
  %417 = vmatpush2.msra.mxu0 0.0
  %418 = vmatprep.subr.mxu0 0.0
  %419 = vmatpush2.msra.mxu0 0.0
  %420 = vmatprep.subr.mxu0 0.0
  %421 = vmatpush2.msra.mxu0 0.0
  %422 = vmatprep.subr.mxu0 0.0
  %423 = vmatpush2.msra.mxu0 0.0
  %424 = vmatprep.subr.mxu0 0.0
  %425 = vmatpush2.msra.mxu0 0.0
  %426 = vmatprep.mubr.f32.mxu0 0.0
  %427 = vmatmul.mubr.f32.gmra.mxu0 %v34
  %v428 = vpop.f32.mrf.mxu0
  %v429 = vadd.f32 0.0, %v428
  %v430 = vpop.f32.mrf.mxu0
  %v431 = vadd.f32 0.0, %v430
  %432 = vdwg.mxu0
  %433 = vmatprep.subr.mxu0 0.0
  %434 = vmatpush1.msra.mxu0 0.0
  %435 = vmatprep.subr.mxu0 0.0
  %436 = vmatpush1.msra.mxu0 0.0
  %437 = vmatprep.subr.mxu0 0.0
  %438 = vmatpush1.msra.mxu0 0.0
  %439 = vmatprep.subr.mxu0 0.0
  %440 = vmatpush1.msra.mxu0 0.0
  %441 = vmatprep.subr.mxu0 0.0
  %442 = vmatpush1.msra.mxu0 0.0
  %443 = vmatprep.subr.mxu0 0.0
  %444 = vmatpush1.msra.mxu0 0.0
  %445 = vmatprep.subr.mxu0 0.0
  %446 = vmatpush1.msra.mxu0 0.0
  %447 = vmatprep.subr.mxu0 0.0
  %448 = vmatpush1.msra.mxu0 0.0
  %449 = vmatprep.subr.mxu0 0.0
  %450 = vmatpush1.msra.mxu0 0.0
  %451 = vmatprep.subr.mxu0 0.0
  %452 = vmatpush1.msra.mxu0 0.0
  %453 = vmatprep.subr.mxu0 0.0
  %454 = vmatpush1.msra.mxu0 0.0
  %455 = vmatprep.subr.mxu0 %v361
  %456 = vmatpush1.msra.mxu0 %v360
  %457 = vmatprep.subr.mxu0 %v357
  %458 = vmatpush1.msra.mxu0 %v356
  %459 = vmatprep.subr.mxu0 %v353
  %460 = vmatpush1.msra.mxu0 %v352
  %461 = vmatprep.subr.mxu0 %v349
  %462 = vmatpush1.msra.mxu0 %v348
  %463 = vmatprep.subr.mxu0 %v345
  %464 = vmatpush1.msra.mxu0 %v344
  %465 = vmatprep.subr.mxu0 0.0
  %466 = vmatpush2.msra.mxu0 0.0
  %467 = vmatprep.subr.mxu0 0.0
  %468 = vmatpush2.msra.mxu0 0.0
  %469 = vmatprep.subr.mxu0 0.0
  %470 = vmatpush2.msra.mxu0 0.0
  %471 = vmatprep.subr.mxu0 0.0
  %472 = vmatpush2.msra.mxu0 0.0
  %473 = vmatprep.subr.mxu0 0.0
  %474 = vmatpush2.msra.mxu0 0.0
  %475 = vmatprep.subr.mxu0 0.0
  %476 = vmatpush2.msra.mxu0 0.0
  %477 = vmatprep.subr.mxu0 0.0
  %478 = vmatpush2.msra.mxu0 0.0
  %479 = vmatprep.subr.mxu0 0.0
  %480 = vmatpush2.msra.mxu0 0.0
  %481 = vmatprep.subr.mxu0 0.0
  %482 = vmatpush2.msra.mxu0 0.0
  %483 = vmatprep.subr.mxu0 0.0
  %484 = vmatpush2.msra.mxu0 0.0
  %485 = vmatprep.subr.mxu0 0.0
  %486 = vmatpush2.msra.mxu0 0.0
  %487 = vmatprep.subr.mxu0 0.0
  %488 = vmatpush2.msra.mxu0 0.0
  %489 = vmatprep.subr.mxu0 0.0
  %490 = vmatpush2.msra.mxu0 0.0
  %491 = vmatprep.subr.mxu0 0.0
  %492 = vmatpush2.msra.mxu0 0.0
  %493 = vmatprep.subr.mxu0 0.0
  %494 = vmatpush2.msra.mxu0 0.0
  %495 = vmatprep.subr.mxu0 0.0
  %496 = vmatpush2.msra.mxu0 0.0
  %497 = vmatprep.mubr.f32.mxu0 0.0
  %498 = vmatmul.mubr.f32.gmra.mxu0 %v34
  %v499 = vpop.f32.mrf.mxu0
  %v500 = vadd.f32 0.0, %v499
  %v501 = vpop.f32.mrf.mxu0
  %v502 = vadd.f32 0.0, %v501
  %503 = vdwg.mxu0
  %s504 = scalar_lea.vmem %s0, 480
  %v505 = vld [vmem:[%s504] sm:$0xff]
  %v506 = vld [vmem:[%s504 + $0x8] sm:$0xff]
  %v507 = vld [vmem:[%s504 + $0x10] sm:$0xff]
  %v508 = vld [vmem:[%s504 + $0x18] sm:$0xff]
  %v509 = vld [vmem:[%s504 + $0x20] sm:$0xff]
  %v510 = vld [vmem:[%s504 + $0x28] sm:$0xff]
  %v511 = vld [vmem:[%s504 + $0x30] sm:$0xff]
  %v512 = vld [vmem:[%s504 + $0x38] sm:$0xff]
  %v513 = vld [vmem:[%s504 + $0x40] sm:$0xff]
  %v514 = vld [vmem:[%s504 + $0x48] sm:$0xff]
  %v515 = vld [vmem:[%s504 + $0x50] sm:$0xff]
  %v516 = vld [vmem:[%s504 + $0x58] sm:$0xff]
  %v517 = vld [vmem:[%s504 + $0x60] sm:$0xff]
  %v518 = vld [vmem:[%s504 + $0x68] sm:$0xff]
  %v519 = vld [vmem:[%s504 + $0x70] sm:$0xff]
  %v520 = vld [vmem:[%s504 + $0x78] sm:$0xff]
  %v521 = vld [vmem:[%s504 + $0x80] sm:$0xff]
  %v522 = vld [vmem:[%s504 + $0x88] sm:$0xff]
  %v523 = vld [vmem:[%s504 + $0x90] sm:$0xff]
  %v524 = vld [vmem:[%s504 + $0x98] sm:$0xff]
  %525 = vmatprep.subr.mxu0 0.0
  %526 = vmatpush1.msra.mxu0 0.0
  %527 = vmatprep.subr.mxu0 0.0
  %528 = vmatpush1.msra.mxu0 0.0
  %529 = vmatprep.subr.mxu0 0.0
  %530 = vmatpush1.msra.mxu0 0.0
  %531 = vmatprep.subr.mxu0 0.0
  %532 = vmatpush1.msra.mxu0 0.0
  %533 = vmatprep.subr.mxu0 0.0
  %534 = vmatpush1.msra.mxu0 0.0
  %535 = vmatprep.subr.mxu0 0.0
  %536 = vmatpush1.msra.mxu0 0.0
  %537 = vmatprep.subr.mxu0 0.0
  %538 = vmatpush1.msra.mxu0 0.0
  %539 = vmatprep.subr.mxu0 0.0
  %540 = vmatpush1.msra.mxu0 0.0
  %541 = vmatprep.subr.mxu0 0.0
  %542 = vmatpush1.msra.mxu0 0.0
  %543 = vmatprep.subr.mxu0 0.0
  %544 = vmatpush1.msra.mxu0 0.0
  %545 = vmatprep.subr.mxu0 0.0
  %546 = vmatpush1.msra.mxu0 0.0
  %547 = vmatprep.subr.mxu0 %v522
  %548 = vmatpush1.msra.mxu0 %v521
  %549 = vmatprep.subr.mxu0 %v518
  %550 = vmatpush1.msra.mxu0 %v517
  %551 = vmatprep.subr.mxu0 %v514
  %552 = vmatpush1.msra.mxu0 %v513
  %553 = vmatprep.subr.mxu0 %v510
  %554 = vmatpush1.msra.mxu0 %v509
  %555 = vmatprep.subr.mxu0 %v506
  %556 = vmatpush1.msra.mxu0 %v505
  %557 = vmatprep.subr.mxu0 0.0
  %558 = vmatpush2.msra.mxu0 0.0
  %559 = vmatprep.subr.mxu0 0.0
  %560 = vmatpush2.msra.mxu0 0.0
  %561 = vmatprep.subr.mxu0 0.0
  %562 = vmatpush2.msra.mxu0 0.0
  %563 = vmatprep.subr.mxu0 0.0
  %564 = vmatpush2.msra.mxu0 0.0
  %565 = vmatprep.subr.mxu0 0.0
  %566 = vmatpush2.msra.mxu0 0.0
  %567 = vmatprep.subr.mxu0 0.0
  %568 = vmatpush2.msra.mxu0 0.0
  %569 = vmatprep.subr.mxu0 0.0
  %570 = vmatpush2.msra.mxu0 0.0
  %571 = vmatprep.subr.mxu0 0.0
  %572 = vmatpush2.msra.mxu0 0.0
  %573 = vmatprep.subr.mxu0 0.0
  %574 = vmatpush2.msra.mxu0 0.0
  %575 = vmatprep.subr.mxu0 0.0
  %576 = vmatpush2.msra.mxu0 0.0
  %577 = vmatprep.subr.mxu0 0.0
  %578 = vmatpush2.msra.mxu0 0.0
  %579 = vmatprep.subr.mxu0 0.0
  %580 = vmatpush2.msra.mxu0 0.0
  %581 = vmatprep.subr.mxu0 0.0
  %582 = vmatpush2.msra.mxu0 0.0
  %583 = vmatprep.subr.mxu0 0.0
  %584 = vmatpush2.msra.mxu0 0.0
  %585 = vmatprep.subr.mxu0 0.0
  %586 = vmatpush2.msra.mxu0 0.0
  %587 = vmatprep.subr.mxu0 0.0
  %588 = vmatpush2.msra.mxu0 0.0
  %589 = vmatprep.mubr.f32.mxu0 0.0
  %590 = vmatmul.mubr.f32.gmra.mxu0 %v34
  %v591 = vpop.f32.mrf.mxu0
  %v592 = vadd.f32 0.0, %v591
  %v593 = vpop.f32.mrf.mxu0
  %v594 = vadd.f32 0.0, %v593
  %595 = vdwg.mxu0
  %596 = vmatprep.subr.mxu0 0.0
  %597 = vmatpush1.msra.mxu0 0.0
  %598 = vmatprep.subr.mxu0 0.0
  %599 = vmatpush1.msra.mxu0 0.0
  %600 = vmatprep.subr.mxu0 0.0
  %601 = vmatpush1.msra.mxu0 0.0
  %602 = vmatprep.subr.mxu0 0.0
  %603 = vmatpush1.msra.mxu0 0.0
  %604 = vmatprep.subr.mxu0 0.0
  %605 = vmatpush1.msra.mxu0 0.0
  %606 = vmatprep.subr.mxu0 0.0
  %607 = vmatpush1.msra.mxu0 0.0
  %608 = vmatprep.subr.mxu0 0.0
  %609 = vmatpush1.msra.mxu0 0.0
  %610 = vmatprep.subr.mxu0 0.0
  %611 = vmatpush1.msra.mxu0 0.0
  %612 = vmatprep.subr.mxu0 0.0
  %613 = vmatpush1.msra.mxu0 0.0
  %614 = vmatprep.subr.mxu0 0.0
  %615 = vmatpush1.msra.mxu0 0.0
  %616 = vmatprep.subr.mxu0 0.0
  %617 = vmatpush1.msra.mxu0 0.0
  %618 = vmatprep.subr.mxu0 %v524
  %619 = vmatpush1.msra.mxu0 %v523
  %620 = vmatprep.subr.mxu0 %v520
  %621 = vmatpush1.msra.mxu0 %v519
  %622 = vmatprep.subr.mxu0 %v516
  %623 = vmatpush1.msra.mxu0 %v515
  %624 = vmatprep.subr.mxu0 %v512
  %625 = vmatpush1.msra.mxu0 %v511
  %626 = vmatprep.subr.mxu0 %v508
  %627 = vmatpush1.msra.mxu0 %v507
  %628 = vmatprep.subr.mxu0 0.0
  %629 = vmatpush2.msra.mxu0 0.0
  %630 = vmatprep.subr.mxu0 0.0
  %631 = vmatpush2.msra.mxu0 0.0
  %632 = vmatprep.subr.mxu0 0.0
  %633 = vmatpush2.msra.mxu0 0.0
  %634 = vmatprep.subr.mxu0 0.0
  %635 = vmatpush2.msra.mxu0 0.0
  %636 = vmatprep.subr.mxu0 0.0
  %637 = vmatpush2.msra.mxu0 0.0
  %638 = vmatprep.subr.mxu0 0.0
  %639 = vmatpush2.msra.mxu0 0.0
  %640 = vmatprep.subr.mxu0 0.0
  %641 = vmatpush2.msra.mxu0 0.0
  %642 = vmatprep.subr.mxu0 0.0
  %643 = vmatpush2.msra.mxu0 0.0
  %644 = vmatprep.subr.mxu0 0.0
  %645 = vmatpush2.msra.mxu0 0.0
  %646 = vmatprep.subr.mxu0 0.0
  %647 = vmatpush2.msra.mxu0 0.0
  %648 = vmatprep.subr.mxu0 0.0
  %649 = vmatpush2.msra.mxu0 0.0
  %650 = vmatprep.subr.mxu0 0.0
  %651 = vmatpush2.msra.mxu0 0.0
  %652 = vmatprep.subr.mxu0 0.0
  %653 = vmatpush2.msra.mxu0 0.0
  %654 = vmatprep.subr.mxu0 0.0
  %655 = vmatpush2.msra.mxu0 0.0
  %656 = vmatprep.subr.mxu0 0.0
  %657 = vmatpush2.msra.mxu0 0.0
  %658 = vmatprep.subr.mxu0 0.0
  %659 = vmatpush2.msra.mxu0 0.0
  %660 = vmatprep.mubr.f32.mxu0 0.0
  %661 = vmatmul.mubr.f32.gmra.mxu0 %v34
  %v662 = vpop.f32.mrf.mxu0
  %v663 = vadd.f32 0.0, %v662
  %v664 = vpop.f32.mrf.mxu0
  %v665 = vadd.f32 0.0, %v664
  %666 = vdwg.mxu0
  %v667 = vadd.f32 %v103, %v266
  %v668 = vadd.f32 %v105, %v268
  %v669 = vadd.f32 %v174, %v337
  %v670 = vadd.f32 %v176, %v339
  %v671 = vadd.f32 %v667, %v429
  %v672 = vadd.f32 %v668, %v431
  %v673 = vadd.f32 %v669, %v500
  %v674 = vadd.f32 %v670, %v502
  %v675 = vadd.f32 %v671, %v592
  %v676 = vadd.f32 %v672, %v594
  %v677 = vadd.f32 %v673, %v663
  %v678 = vadd.f32 %v674, %v665
  %v679 = vadd.f32 %v675, %v676
  %v680 = vadd.f32 %v679, %v677
  %v681 = vadd.f32 %v680, %v678
  %682 = vadd.xlane.f32.xlu0 %v681
  %v683 = vpop.xlane.xlu0 %682
  %v684 = vrcp.pop 2048.0
  %v685 = vmul.f32 %v683, %v684
  %v686 = vsub.f32 %v103, %v685
  %v687 = vsub.f32 %v105, %v685
  %v688 = vsub.f32 %v174, %v685
  %v689 = vsub.f32 %v176, %v685
  %v690 = vmul.f32 %v686, %v686
  %v691 = vmul.f32 %v687, %v687
  %v692 = vmul.f32 %v688, %v688
  %v693 = vmul.f32 %v689, %v689
  %v694 = vadd.f32 %v690, %v691
  %v695 = vadd.f32 %v694, %v692
  %v696 = vadd.f32 %v695, %v693
  %697 = vadd.xlane.f32.xlu0 %v696
  %v698 = vpop.xlane.xlu0 %697
  %v699 = vsub.f32 %v266, %v685
  %v700 = vsub.f32 %v268, %v685
  %v701 = vsub.f32 %v337, %v685
  %v702 = vsub.f32 %v339, %v685
  %v703 = vmul.f32 %v699, %v699
  %v704 = vmul.f32 %v700, %v700
  %v705 = vmul.f32 %v701, %v701
  %v706 = vmul.f32 %v702, %v702
  %v707 = vadd.f32 %v703, %v704
  %v708 = vadd.f32 %v707, %v705
  %v709 = vadd.f32 %v708, %v706
  %710 = vadd.xlane.f32.xlu0 %v709
  %v711 = vpop.xlane.xlu0 %710
  %v712 = vadd.f32 %v698, %v711
  %v713 = vsub.f32 %v429, %v685
  %v714 = vsub.f32 %v431, %v685
  %v715 = vsub.f32 %v500, %v685
  %v716 = vsub.f32 %v502, %v685
  %v717 = vmul.f32 %v713, %v713
  %v718 = vmul.f32 %v714, %v714
  %v719 = vmul.f32 %v715, %v715
  %v720 = vmul.f32 %v716, %v716
  %v721 = vadd.f32 %v717, %v718
  %v722 = vadd.f32 %v721, %v719
  %v723 = vadd.f32 %v722, %v720
  %724 = vadd.xlane.f32.xlu0 %v723
  %v725 = vpop.xlane.xlu0 %724
  %v726 = vadd.f32 %v712, %v725
  %v727 = vsub.f32 %v592, %v685
  %v728 = vsub.f32 %v594, %v685
  %v729 = vsub.f32 %v663, %v685
  %v730 = vsub.f32 %v665, %v685
  %v731 = vmul.f32 %v727, %v727
  %v732 = vmul.f32 %v728, %v728
  %v733 = vmul.f32 %v729, %v729
  %v734 = vmul.f32 %v730, %v730
  %v735 = vadd.f32 %v731, %v732
  %v736 = vadd.f32 %v735, %v733
  %v737 = vadd.f32 %v736, %v734
  %738 = vadd.xlane.f32.xlu0 %v737
  %v739 = vpop.xlane.xlu0 %738
  %v740 = vadd.f32 %v726, %v739
  %v741 = vmul.f32 %v740, %v684
  %v742 = vadd.f32 %v741, 0.0001
  %v743 = vrsqrt.pop %v742
  %v744 = vmax.f32 %v103, %v266
  %v745 = vmax.f32 %v105, %v268
  %v746 = vmax.f32 %v174, %v337
  %v747 = vmax.f32 %v176, %v339
  %v748 = vmax.f32 %v429, %v592
  %v749 = vmax.f32 %v431, %v594
  %v750 = vmax.f32 %v500, %v663
  %v751 = vmax.f32 %v502, %v665
  %v752 = vmax.f32 %v744, %v748
  %v753 = vmax.f32 %v745, %v749
  %v754 = vmax.f32 %v746, %v750
  %v755 = vmax.f32 %v747, %v751
  %v756 = vsub.f32 %v752, %v685
  %v757 = vsub.f32 %v753, %v685
  %v758 = vsub.f32 %v754, %v685
  %v759 = vsub.f32 %v755, %v685
  %v760 = vmul.f32 %v756, %v743
  %v761 = vmul.f32 %v757, %v743
  %v762 = vmul.f32 %v758, %v743
  %v763 = vmul.f32 %v759, %v743
  %vm764 = vcmp.gt.f32.partialorder %v760, 0.0
  %vm765 = vcmp.gt.f32.partialorder %v761, 0.0
  %vm766 = vcmp.gt.f32.partialorder %v762, 0.0
  %vm767 = vcmp.gt.f32.partialorder %v763, 0.0
  %v768 = vmul.f32 %v760, 1.442695
  %v769 = vpow.pop %v768
  %v770 = vmul.f32 %v761, 1.442695
  %v771 = vpow.pop %v770
  %v772 = vmul.f32 %v762, 1.442695
  %v773 = vpow.pop %v772
  %v774 = vmul.f32 %v763, 1.442695
  %v775 = vpow.pop %v774
  %v776 = vsub.f32 %v769, 1.0
  %v777 = vsub.f32 %v771, 1.0
  %v778 = vsub.f32 %v773, 1.0
  %v779 = vsub.f32 %v775, 1.0
  %v780 = vsel %vm764, %v760, %v776
  %v781 = vsel %vm765, %v761, %v777
  %v782 = vsel %vm766, %v762, %v778
  %v783 = vsel %vm767, %v763, %v779
  %784 = vst [vmem:[%s2] sm:$0xff] %v780
  %785 = vst [vmem:[%s2 + $0x8] sm:$0xff] %v781
  %786 = vst [vmem:[%s2 + $0x10] sm:$0xff] %v782
  %787 = vst [vmem:[%s2 + $0x18] sm:$0xff] %v783
  // Predicated region
  $region10: #{enc_forward.4} parent=0 // pred_check
    _
  $region11: #{enc_forward.4} parent=0 // pred_check_branch
    %789 = sbr.rel (0) target = $region13
  $region12: #{enc_forward.4} parent=0 // pred_region
    _
  $region13: #{enc_forward.4} parent=0 // pred_fallthru
    _
  // Predicated region
  $region14: #{enc_forward.4} parent=0 // pred_check
    _
  $region15: #{enc_forward.4} parent=0 // pred_check_branch
    %791 = sbr.rel (0) target = $region17
  $region16: #{enc_forward.4} parent=0 // pred_region
    _
  $region17: #{enc_forward.4} parent=0 // pred_fallthru
    _

// kernel: enc_forward.5
$region0: #{enc_forward.5}
  #allocation0 [shape = 'u32[]', space=smem, size = 0x4, offset = 0x4, fixed_abs, tag = 'smem constant byte address 0x4 - core index']
  #allocation1 [shape = 'u32[144,128]{1,0:T(1,128)}', space=vmem, size = 0x12000, scoped, tag = 'internal scratch']
  %s0 = inlined_call_operand.vmem [shape: f32[4,72,128], index: 0, kind: input, shape index: {}]
  %s1 = inlined_call_operand.vmem [shape: f32[16,72], index: 1, kind: input, shape index: {}]
  %s2 = inlined_call_operand.vmem [shape: f32[16,128], index: 2, kind: output, shape index: {}]
  %s3 = sld [smem:[#allocation0]]
  $region18: #{enc_forward.5} parent=0
    _
  %s5 = ssub.s32 1, %s3
  %s6 = scalar_select 0, %s5, %s3
  // Predicated region
  $region2: #{enc_forward.5} parent=0 // pred_check
    _
  $region3: #{enc_forward.5} parent=0 // pred_check_branch
    %8 = sbr.rel (0) target = $region5
  $region4: #{enc_forward.5} parent=0 // pred_region
    _
  $region5: #{enc_forward.5} parent=0 // pred_fallthru
    _
  // Predicated region
  $region6: #{enc_forward.5} parent=0 // pred_check
    _
  $region7: #{enc_forward.5} parent=0 // pred_check_branch
    %10 = sbr.rel (0) target = $region9
  $region8: #{enc_forward.5} parent=0 // pred_region
    _
  $region9: #{enc_forward.5} parent=0 // pred_fallthru
    _
  %v11 = vld [vmem:[%s1] sm:$0xff]
  %v12 = vld [vmem:[%s1 + $0x8] sm:$0xff]
  %v13 = vld [vmem:[%s0] sm:$0xff]
  %v14 = vld [vmem:[%s0 + $0x8] sm:$0xff]
  %v15 = vld [vmem:[%s0 + $0x10] sm:$0xff]
  %v16 = vld [vmem:[%s0 + $0x18] sm:$0xff]
  %v17 = vld [vmem:[%s0 + $0x20] sm:$0xff]
  %v18 = vld [vmem:[%s0 + $0x28] sm:$0xff]
  %v19 = vld [vmem:[%s0 + $0x30] sm:$0xff]
  %v20 = vld [vmem:[%s0 + $0x38] sm:$0xff]
  %v21 = vld [vmem:[%s0 + $0x40] sm:$0xff]
  %vm22 = vcmask 588800
  %v24 = vsel %vm22, %v11, 0
  %v27 = vsel %vm22, %v12, 0
  %29 = vmatprep.subr.mxu0 0.0
  %30 = vmatpush1.msra.mxu0 0.0
  %31 = vmatprep.subr.mxu0 0.0
  %32 = vmatpush1.msra.mxu0 0.0
  %33 = vmatprep.subr.mxu0 0.0
  %34 = vmatpush1.msra.mxu0 0.0
  %35 = vmatprep.subr.mxu0 0.0
  %36 = vmatpush1.msra.mxu0 0.0
  %37 = vmatprep.subr.mxu0 0.0
  %38 = vmatpush1.msra.mxu0 0.0
  %39 = vmatprep.subr.mxu0 0.0
  %40 = vmatpush1.msra.mxu0 0.0
  %41 = vmatprep.subr.mxu0 0.0
  %42 = vmatpush1.msra.mxu0 0.0
  %43 = vmatprep.subr.mxu0 0.0
  %44 = vmatpush1.msra.mxu0 %v21
  %45 = vmatprep.subr.mxu0 0.0
  %46 = vmatpush1.msra.mxu0 %v20
  %47 = vmatprep.subr.mxu0 0.0
  %48 = vmatpush1.msra.mxu0 %v19
  %49 = vmatprep.subr.mxu0 0.0
  %50 = vmatpush1.msra.mxu0 %v18
  %51 = vmatprep.subr.mxu0 0.0
  %52 = vmatpush1.msra.mxu0 %v17
  %53 = vmatprep.subr.mxu0 0.0
  %54 = vmatpush1.msra.mxu0 %v16
  %55 = vmatprep.subr.mxu0 0.0
  %56 = vmatpush1.msra.mxu0 %v15
  %57 = vmatprep.subr.mxu0 0.0
  %58 = vmatpush1.msra.mxu0 %v14
  %59 = vmatprep.subr.mxu0 0.0
  %60 = vmatpush1.msra.mxu0 %v13
  %61 = vmatprep.subr.mxu0 0.0
  %62 = vmatpush2.msra.mxu0 0.0
  %63 = vmatprep.subr.mxu0 0.0
  %64 = vmatpush2.msra.mxu0 0.0
  %65 = vmatprep.subr.mxu0 0.0
  %66 = vmatpush2.msra.mxu0 0.0
  %67 = vmatprep.subr.mxu0 0.0
  %68 = vmatpush2.msra.mxu0 0.0
  %69 = vmatprep.subr.mxu0 0.0
  %70 = vmatpush2.msra.mxu0 0.0
  %71 = vmatprep.subr.mxu0 0.0
  %72 = vmatpush2.msra.mxu0 0.0
  %73 = vmatprep.subr.mxu0 0.0
  %74 = vmatpush2.msra.mxu0 0.0
  %75 = vmatprep.subr.mxu0 0.0
  %76 = vmatpush2.msra.mxu0 0.0
  %77 = vmatprep.subr.mxu0 0.0
  %78 = vmatpush2.msra.mxu0 0.0
  %79 = vmatprep.subr.mxu0 0.0
  %80 = vmatpush2.msra.mxu0 0.0
  %81 = vmatprep.subr.mxu0 0.0
  %82 = vmatpush2.msra.mxu0 0.0
  %83 = vmatprep.subr.mxu0 0.0
  %84 = vmatpush2.msra.mxu0 0.0
  %85 = vmatprep.subr.mxu0 0.0
  %86 = vmatpush2.msra.mxu0 0.0
  %87 = vmatprep.subr.mxu0 0.0
  %88 = vmatpush2.msra.mxu0 0.0
  %89 = vmatprep.subr.mxu0 0.0
  %90 = vmatpush2.msra.mxu0 0.0
  %91 = vmatprep.subr.mxu0 0.0
  %92 = vmatpush2.msra.mxu0 0.0
  %93 = vmatprep.mubr.f32.mxu0 0.0
  %94 = vmatmul.mubr.f32.gmra.mxu0 %v24
  %v95 = vpop.f32.mrf.mxu0
  %v96 = vadd.f32 0.0, %v95
  %v97 = vpop.f32.mrf.mxu0
  %98 = vmatprep.mubr.f32.mxu0 0.0
  %99 = vmatmul.mubr.f32.gmra.mxu0 %v27
  %v100 = vpop.f32.mrf.mxu0
  %v101 = vadd.f32 0.0, %v100
  %v102 = vpop.f32.mrf.mxu0
  %103 = vdwg.mxu0
  %s104 = scalar_lea.vmem %s0, 72
  %v105 = vld [vmem:[%s104] sm:$0xff]
  %v106 = vld [vmem:[%s104 + $0x8] sm:$0xff]
  %v107 = vld [vmem:[%s104 + $0x10] sm:$0xff]
  %v108 = vld [vmem:[%s104 + $0x18] sm:$0xff]
  %v109 = vld [vmem:[%s104 + $0x20] sm:$0xff]
  %v110 = vld [vmem:[%s104 + $0x28] sm:$0xff]
  %v111 = vld [vmem:[%s104 + $0x30] sm:$0xff]
  %v112 = vld [vmem:[%s104 + $0x38] sm:$0xff]
  %v113 = vld [vmem:[%s104 + $0x40] sm:$0xff]
  %114 = vmatprep.subr.mxu0 0.0
  %115 = vmatpush1.msra.mxu0 0.0
  %116 = vmatprep.subr.mxu0 0.0
  %117 = vmatpush1.msra.mxu0 0.0
  %118 = vmatprep.subr.mxu0 0.0
  %119 = vmatpush1.msra.mxu0 0.0
  %120 = vmatprep.subr.mxu0 0.0
  %121 = vmatpush1.msra.mxu0 0.0
  %122 = vmatprep.subr.mxu0 0.0
  %123 = vmatpush1.msra.mxu0 0.0
  %124 = vmatprep.subr.mxu0 0.0
  %125 = vmatpush1.msra.mxu0 0.0
  %126 = vmatprep.subr.mxu0 0.0
  %127 = vmatpush1.msra.mxu0 0.0
  %128 = vmatprep.subr.mxu0 0.0
  %129 = vmatpush1.msra.mxu0 %v113
  %130 = vmatprep.subr.mxu0 0.0
  %131 = vmatpush1.msra.mxu0 %v112
  %132 = vmatprep.subr.mxu0 0.0
  %133 = vmatpush1.msra.mxu0 %v111
  %134 = vmatprep.subr.mxu0 0.0
  %135 = vmatpush1.msra.mxu0 %v110
  %136 = vmatprep.subr.mxu0 0.0
  %137 = vmatpush1.msra.mxu0 %v109
  %138 = vmatprep.subr.mxu0 0.0
  %139 = vmatpush1.msra.mxu0 %v108
  %140 = vmatprep.subr.mxu0 0.0
  %141 = vmatpush1.msra.mxu0 %v107
  %142 = vmatprep.subr.mxu0 0.0
  %143 = vmatpush1.msra.mxu0 %v106
  %144 = vmatprep.subr.mxu0 0.0
  %145 = vmatpush1.msra.mxu0 %v105
  %146 = vmatprep.subr.mxu0 0.0
  %147 = vmatpush2.msra.mxu0 0.0
  %148 = vmatprep.subr.mxu0 0.0
  %149 = vmatpush2.msra.mxu0 0.0
  %150 = vmatprep.subr.mxu0 0.0
  %151 = vmatpush2.msra.mxu0 0.0
  %152 = vmatprep.subr.mxu0 0.0
  %153 = vmatpush2.msra.mxu0 0.0
  %154 = vmatprep.subr.mxu0 0.0
  %155 = vmatpush2.msra.mxu0 0.0
  %156 = vmatprep.subr.mxu0 0.0
  %157 = vmatpush2.msra.mxu0 0.0
  %158 = vmatprep.subr.mxu0 0.0
  %159 = vmatpush2.msra.mxu0 0.0
  %160 = vmatprep.subr.mxu0 0.0
  %161 = vmatpush2.msra.mxu0 0.0
  %162 = vmatprep.subr.mxu0 0.0
  %163 = vmatpush2.msra.mxu0 0.0
  %164 = vmatprep.subr.mxu0 0.0
  %165 = vmatpush2.msra.mxu0 0.0
  %166 = vmatprep.subr.mxu0 0.0
  %167 = vmatpush2.msra.mxu0 0.0
  %168 = vmatprep.subr.mxu0 0.0
  %169 = vmatpush2.msra.mxu0 0.0
  %170 = vmatprep.subr.mxu0 0.0
  %171 = vmatpush2.msra.mxu0 0.0
  %172 = vmatprep.subr.mxu0 0.0
  %173 = vmatpush2.msra.mxu0 0.0
  %174 = vmatprep.subr.mxu0 0.0
  %175 = vmatpush2.msra.mxu0 0.0
  %176 = vmatprep.subr.mxu0 0.0
  %177 = vmatpush2.msra.mxu0 0.0
  %178 = vmatprep.mubr.f32.mxu0 0.0
  %179 = vmatmul.mubr.f32.gmra.mxu0 %v24
  %v180 = vpop.f32.mrf.mxu0
  %v181 = vadd.f32 0.0, %v180
  %v182 = vpop.f32.mrf.mxu0
  %183 = vmatprep.mubr.f32.mxu0 0.0
  %184 = vmatmul.mubr.f32.gmra.mxu0 %v27
  %v185 = vpop.f32.mrf.mxu0
  %v186 = vadd.f32 0.0, %v185
  %v187 = vpop.f32.mrf.mxu0
  %188 = vdwg.mxu0
  %s189 = scalar_lea.vmem %s0, 144
  %v190 = vld [vmem:[%s189] sm:$0xff]
  %v191 = vld [vmem:[%s189 + $0x8] sm:$0xff]
  %v192 = vld [vmem:[%s189 + $0x10] sm:$0xff]
  %v193 = vld [vmem:[%s189 + $0x18] sm:$0xff]
  %v194 = vld [vmem:[%s189 + $0x20] sm:$0xff]
  %v195 = vld [vmem:[%s189 + $0x28] sm:$0xff]
  %v196 = vld [vmem:[%s189 + $0x30] sm:$0xff]
  %v197 = vld [vmem:[%s189 + $0x38] sm:$0xff]
  %v198 = vld [vmem:[%s189 + $0x40] sm:$0xff]
  %199 = vmatprep.subr.mxu0 0.0
  %200 = vmatpush1.msra.mxu0 0.0
  %201 = vmatprep.subr.mxu0 0.0
  %202 = vmatpush1.msra.mxu0 0.0
  %203 = vmatprep.subr.mxu0 0.0
  %204 = vmatpush1.msra.mxu0 0.0
  %205 = vmatprep.subr.mxu0 0.0
  %206 = vmatpush1.msra.mxu0 0.0
  %207 = vmatprep.subr.mxu0 0.0
  %208 = vmatpush1.msra.mxu0 0.0
  %209 = vmatprep.subr.mxu0 0.0
  %210 = vmatpush1.msra.mxu0 0.0
  %211 = vmatprep.subr.mxu0 0.0
  %212 = vmatpush1.msra.mxu0 0.0
  %213 = vmatprep.subr.mxu0 0.0
  %214 = vmatpush1.msra.mxu0 %v198
  %215 = vmatprep.subr.mxu0 0.0
  %216 = vmatpush1.msra.mxu0 %v197
  %217 = vmatprep.subr.mxu0 0.0
  %218 = vmatpush1.msra.mxu0 %v196
  %219 = vmatprep.subr.mxu0 0.0
  %220 = vmatpush1.msra.mxu0 %v195
  %221 = vmatprep.subr.mxu0 0.0
  %222 = vmatpush1.msra.mxu0 %v194
  %223 = vmatprep.subr.mxu0 0.0
  %224 = vmatpush1.msra.mxu0 %v193
  %225 = vmatprep.subr.mxu0 0.0
  %226 = vmatpush1.msra.mxu0 %v192
  %227 = vmatprep.subr.mxu0 0.0
  %228 = vmatpush1.msra.mxu0 %v191
  %229 = vmatprep.subr.mxu0 0.0
  %230 = vmatpush1.msra.mxu0 %v190
  %231 = vmatprep.subr.mxu0 0.0
  %232 = vmatpush2.msra.mxu0 0.0
  %233 = vmatprep.subr.mxu0 0.0
  %234 = vmatpush2.msra.mxu0 0.0
  %235 = vmatprep.subr.mxu0 0.0
  %236 = vmatpush2.msra.mxu0 0.0
  %237 = vmatprep.subr.mxu0 0.0
  %238 = vmatpush2.msra.mxu0 0.0
  %239 = vmatprep.subr.mxu0 0.0
  %240 = vmatpush2.msra.mxu0 0.0
  %241 = vmatprep.subr.mxu0 0.0
  %242 = vmatpush2.msra.mxu0 0.0
  %243 = vmatprep.subr.mxu0 0.0
  %244 = vmatpush2.msra.mxu0 0.0
  %245 = vmatprep.subr.mxu0 0.0
  %246 = vmatpush2.msra.mxu0 0.0
  %247 = vmatprep.subr.mxu0 0.0
  %248 = vmatpush2.msra.mxu0 0.0
  %249 = vmatprep.subr.mxu0 0.0
  %250 = vmatpush2.msra.mxu0 0.0
  %251 = vmatprep.subr.mxu0 0.0
  %252 = vmatpush2.msra.mxu0 0.0
  %253 = vmatprep.subr.mxu0 0.0
  %254 = vmatpush2.msra.mxu0 0.0
  %255 = vmatprep.subr.mxu0 0.0
  %256 = vmatpush2.msra.mxu0 0.0
  %257 = vmatprep.subr.mxu0 0.0
  %258 = vmatpush2.msra.mxu0 0.0
  %259 = vmatprep.subr.mxu0 0.0
  %260 = vmatpush2.msra.mxu0 0.0
  %261 = vmatprep.subr.mxu0 0.0
  %262 = vmatpush2.msra.mxu0 0.0
  %263 = vmatprep.mubr.f32.mxu0 0.0
  %264 = vmatmul.mubr.f32.gmra.mxu0 %v24
  %v265 = vpop.f32.mrf.mxu0
  %v266 = vadd.f32 0.0, %v265
  %v267 = vpop.f32.mrf.mxu0
  %268 = vmatprep.mubr.f32.mxu0 0.0
  %269 = vmatmul.mubr.f32.gmra.mxu0 %v27
  %v270 = vpop.f32.mrf.mxu0
  %v271 = vadd.f32 0.0, %v270
  %v272 = vpop.f32.mrf.mxu0
  %273 = vdwg.mxu0
  %s274 = scalar_lea.vmem %s0, 216
  %v275 = vld [vmem:[%s274] sm:$0xff]
  %v276 = vld [vmem:[%s274 + $0x8] sm:$0xff]
  %v277 = vld [vmem:[%s274 + $0x10] sm:$0xff]
  %v278 = vld [vmem:[%s274 + $0x18] sm:$0xff]
  %v279 = vld [vmem:[%s274 + $0x20] sm:$0xff]
  %v280 = vld [vmem:[%s274 + $0x28] sm:$0xff]
  %v281 = vld [vmem:[%s274 + $0x30] sm:$0xff]
  %v282 = vld [vmem:[%s274 + $0x38] sm:$0xff]
  %v283 = vld [vmem:[%s274 + $0x40] sm:$0xff]
  %284 = vmatprep.subr.mxu0 0.0
  %285 = vmatpush1.msra.mxu0 0.0
  %286 = vmatprep.subr.mxu0 0.0
  %287 = vmatpush1.msra.mxu0 0.0
  %288 = vmatprep.subr.mxu0 0.0
  %289 = vmatpush1.msra.mxu0 0.0
  %290 = vmatprep.subr.mxu0 0.0
  %291 = vmatpush1.msra.mxu0 0.0
  %292 = vmatprep.subr.mxu0 0.0
  %293 = vmatpush1.msra.mxu0 0.0
  %294 = vmatprep.subr.mxu0 0.0
  %295 = vmatpush1.msra.mxu0 0.0
  %296 = vmatprep.subr.mxu0 0.0
  %297 = vmatpush1.msra.mxu0 0.0
  %298 = vmatprep.subr.mxu0 0.0
  %299 = vmatpush1.msra.mxu0 %v283
  %300 = vmatprep.subr.mxu0 0.0
  %301 = vmatpush1.msra.mxu0 %v282
  %302 = vmatprep.subr.mxu0 0.0
  %303 = vmatpush1.msra.mxu0 %v281
  %304 = vmatprep.subr.mxu0 0.0
  %305 = vmatpush1.msra.mxu0 %v280
  %306 = vmatprep.subr.mxu0 0.0
  %307 = vmatpush1.msra.mxu0 %v279
  %308 = vmatprep.subr.mxu0 0.0
  %309 = vmatpush1.msra.mxu0 %v278
  %310 = vmatprep.subr.mxu0 0.0
  %311 = vmatpush1.msra.mxu0 %v277
  %312 = vmatprep.subr.mxu0 0.0
  %313 = vmatpush1.msra.mxu0 %v276
  %314 = vmatprep.subr.mxu0 0.0
  %315 = vmatpush1.msra.mxu0 %v275
  %316 = vmatprep.subr.mxu0 0.0
  %317 = vmatpush2.msra.mxu0 0.0
  %318 = vmatprep.subr.mxu0 0.0
  %319 = vmatpush2.msra.mxu0 0.0
  %320 = vmatprep.subr.mxu0 0.0
  %321 = vmatpush2.msra.mxu0 0.0
  %322 = vmatprep.subr.mxu0 0.0
  %323 = vmatpush2.msra.mxu0 0.0
  %324 = vmatprep.subr.mxu0 0.0
  %325 = vmatpush2.msra.mxu0 0.0
  %326 = vmatprep.subr.mxu0 0.0
  %327 = vmatpush2.msra.mxu0 0.0
  %328 = vmatprep.subr.mxu0 0.0
  %329 = vmatpush2.msra.mxu0 0.0
  %330 = vmatprep.subr.mxu0 0.0
  %331 = vmatpush2.msra.mxu0 0.0
  %332 = vmatprep.subr.mxu0 0.0
  %333 = vmatpush2.msra.mxu0 0.0
  %334 = vmatprep.subr.mxu0 0.0
  %335 = vmatpush2.msra.mxu0 0.0
  %336 = vmatprep.subr.mxu0 0.0
  %337 = vmatpush2.msra.mxu0 0.0
  %338 = vmatprep.subr.mxu0 0.0
  %339 = vmatpush2.msra.mxu0 0.0
  %340 = vmatprep.subr.mxu0 0.0
  %341 = vmatpush2.msra.mxu0 0.0
  %342 = vmatprep.subr.mxu0 0.0
  %343 = vmatpush2.msra.mxu0 0.0
  %344 = vmatprep.subr.mxu0 0.0
  %345 = vmatpush2.msra.mxu0 0.0
  %346 = vmatprep.subr.mxu0 0.0
  %347 = vmatpush2.msra.mxu0 0.0
  %348 = vmatprep.mubr.f32.mxu0 0.0
  %349 = vmatmul.mubr.f32.gmra.mxu0 %v24
  %v350 = vpop.f32.mrf.mxu0
  %v351 = vadd.f32 0.0, %v350
  %v352 = vpop.f32.mrf.mxu0
  %353 = vmatprep.mubr.f32.mxu0 0.0
  %354 = vmatmul.mubr.f32.gmra.mxu0 %v27
  %v355 = vpop.f32.mrf.mxu0
  %v356 = vadd.f32 0.0, %v355
  %v357 = vpop.f32.mrf.mxu0
  %358 = vdwg.mxu0
  %v359 = vadd.f32 %v96, %v181
  %v360 = vadd.f32 %v101, %v186
  %v361 = vadd.f32 %v359, %v266
  %v362 = vadd.f32 %v360, %v271
  %v363 = vadd.f32 %v361, %v351
  %v364 = vadd.f32 %v362, %v356
  %365 = vadd.xlane.f32.xlu0 %v363
  %v366 = vpop.xlane.xlu0 %365
  %367 = vadd.xlane.f32.xlu0 %v364
  %v368 = vpop.xlane.xlu0 %367
  %v369 = vrcp.pop 512.0
  %v370 = vmul.f32 %v366, %v369
  %v371 = vmul.f32 %v368, %v369
  %v372 = vsub.f32 %v96, %v370
  %v373 = vsub.f32 %v101, %v371
  %v374 = vmul.f32 %v372, %v372
  %v375 = vmul.f32 %v373, %v373
  %376 = vadd.xlane.f32.xlu0 %v374
  %v377 = vpop.xlane.xlu0 %376
  %378 = vadd.xlane.f32.xlu0 %v375
  %v379 = vpop.xlane.xlu0 %378
  %v380 = vsub.f32 %v181, %v370
  %v381 = vsub.f32 %v186, %v371
  %v382 = vmul.f32 %v380, %v380
  %v383 = vmul.f32 %v381, %v381
  %384 = vadd.xlane.f32.xlu0 %v382
  %v385 = vpop.xlane.xlu0 %384
  %386 = vadd.xlane.f32.xlu0 %v383
  %v387 = vpop.xlane.xlu0 %386
  %v388 = vadd.f32 %v377, %v385
  %v389 = vadd.f32 %v379, %v387
  %v390 = vsub.f32 %v266, %v370
  %v391 = vsub.f32 %v271, %v371
  %v392 = vmul.f32 %v390, %v390
  %v393 = vmul.f32 %v391, %v391
  %394 = vadd.xlane.f32.xlu0 %v392
  %v395 = vpop.xlane.xlu0 %394
  %396 = vadd.xlane.f32.xlu0 %v393
  %v397 = vpop.xlane.xlu0 %396
  %v398 = vadd.f32 %v388, %v395
  %v399 = vadd.f32 %v389, %v397
  %v400 = vsub.f32 %v351, %v370
  %v401 = vsub.f32 %v356, %v371
  %v402 = vmul.f32 %v400, %v400
  %v403 = vmul.f32 %v401, %v401
  %404 = vadd.xlane.f32.xlu0 %v402
  %v405 = vpop.xlane.xlu0 %404
  %406 = vadd.xlane.f32.xlu0 %v403
  %v407 = vpop.xlane.xlu0 %406
  %v408 = vadd.f32 %v398, %v405
  %v409 = vadd.f32 %v399, %v407
  %v410 = vmul.f32 %v408, %v369
  %v411 = vmul.f32 %v409, %v369
  %v412 = vadd.f32 %v410, 0.0001
  %v413 = vadd.f32 %v411, 0.0001
  %v414 = vrsqrt.pop %v412
  %v415 = vrsqrt.pop %v413
  %v416 = vmax.f32 %v96, %v181
  %v417 = vmax.f32 %v101, %v186
  %v418 = vmax.f32 %v266, %v351
  %v419 = vmax.f32 %v271, %v356
  %v420 = vmax.f32 %v416, %v418
  %v421 = vmax.f32 %v417, %v419
  %v422 = vsub.f32 %v420, %v370
  %v423 = vsub.f32 %v421, %v371
  %v424 = vmul.f32 %v422, %v414
  %v425 = vmul.f32 %v423, %v415
  %vm426 = vcmp.gt.f32.partialorder %v424, 0.0
  %vm427 = vcmp.gt.f32.partialorder %v425, 0.0
  %v428 = vmul.f32 %v424, 1.442695
  %v429 = vpow.pop %v428
  %v430 = vmul.f32 %v425, 1.442695
  %v431 = vpow.pop %v430
  %v432 = vsub.f32 %v429, 1.0
  %v433 = vsub.f32 %v431, 1.0
  %v434 = vsel %vm426, %v424, %v432
  %v435 = vsel %vm427, %v425, %v433
  %436 = vst [vmem:[%s2] sm:$0xff] %v434
  %437 = vst [vmem:[%s2 + $0x8] sm:$0xff] %v435
  // Predicated region
  $region10: #{enc_forward.5} parent=0 // pred_check
    _
  $region11: #{enc_forward.5} parent=0 // pred_check_branch
    %439 = sbr.rel (0) target = $region13
  $region12: #{enc_forward.5} parent=0 // pred_region
    _
  $region13: #{enc_forward.5} parent=0 // pred_fallthru
    _
  // Predicated region
  $region14: #{enc_forward.5} parent=0 // pred_check
    _
  $region15: #{enc_forward.5} parent=0 // pred_check_branch
    %441 = sbr.rel (0) target = $region17
  $region16: #{enc_forward.5} parent=0 // pred_region
    _
  $region17: #{enc_forward.5} parent=0 // pred_fallthru
    _

// kernel: enc_forward.7
$region0: #{enc_forward.7}
  #allocation0 [shape = 'u32[]', space=smem, size = 0x4, offset = 0x4, fixed_abs, tag = 'smem constant byte address 0x4 - core index']
  #allocation1 [shape = 'u32[144,128]{1,0:T(1,128)}', space=vmem, size = 0x12000, scoped, tag = 'internal scratch']
  %s0 = inlined_call_operand.vmem [shape: f32[8,64], index: 0, kind: input, shape index: {}]
  %s1 = inlined_call_operand.vmem [shape: f32[64,16], index: 1, kind: input, shape index: {}]
  %s2 = inlined_call_operand.hbm [shape: f32[8,16], index: 2, kind: output, shape index: {}]
  %s3 = sld [smem:[#allocation0]]
  $region18: #{enc_forward.7} parent=0
    _
  %s5 = ssub.s32 1, %s3
  %s6 = scalar_select 0, %s5, %s3
  $region1: #{enc_forward.7} parent=0
    #allocation2 [shape = 'u8[4096]{0}', space=vmem, size = 0x1000, scoped, tag = 'output window, operand 0, single buffered']
    #allocation3 [shape = 's32[1]{0}', space=sflag, size = 0x4, scoped, tag = 'scoped memory for enc_forward.7']
    %7 = vsyncpa [#allocation3], 0
    // Predicated region
    $region2: #{enc_forward.7} parent=1 // pred_check
      _
    $region3: #{enc_forward.7} parent=1 // pred_check_branch
      %9 = sbr.rel (0) target = $region5
    $region4: #{enc_forward.7} parent=1 // pred_region
      _
    $region5: #{enc_forward.7} parent=1 // pred_fallthru
      _
    // Predicated region
    $region6: #{enc_forward.7} parent=1 // pred_check
      _
    $region7: #{enc_forward.7} parent=1 // pred_check_branch
      %11 = sbr.rel (0) target = $region9
    $region8: #{enc_forward.7} parent=1 // pred_region
      _
    $region9: #{enc_forward.7} parent=1 // pred_fallthru
      _
    %v12 = vld [vmem:[%s0] sm:$0xff]
    %v13 = vld [vmem:[%s1] sm:$0xff]
    %v14 = vld [vmem:[%s1 + $0x8] sm:$0xff]
    %v15 = vld [vmem:[%s1 + $0x10] sm:$0xff]
    %v16 = vld [vmem:[%s1 + $0x18] sm:$0xff]
    %v17 = vld [vmem:[%s1 + $0x20] sm:$0xff]
    %v18 = vld [vmem:[%s1 + $0x28] sm:$0xff]
    %v19 = vld [vmem:[%s1 + $0x30] sm:$0xff]
    %v20 = vld [vmem:[%s1 + $0x38] sm:$0xff]
    %vm21 = vcmask 523264
    %v23 = vsel %vm21, %v12, 0
    %25 = vmatprep.subr.mxu0 0.0
    %26 = vmatpush1.msra.mxu0 0.0
    %27 = vmatprep.subr.mxu0 0.0
    %28 = vmatpush1.msra.mxu0 0.0
    %29 = vmatprep.subr.mxu0 0.0
    %30 = vmatpush1.msra.mxu0 0.0
    %31 = vmatprep.subr.mxu0 0.0
    %32 = vmatpush1.msra.mxu0 0.0
    %33 = vmatprep.subr.mxu0 0.0
    %34 = vmatpush1.msra.mxu0 0.0
    %35 = vmatprep.subr.mxu0 0.0
    %36 = vmatpush1.msra.mxu0 0.0
    %37 = vmatprep.subr.mxu0 0.0
    %38 = vmatpush1.msra.mxu0 0.0
    %39 = vmatprep.subr.mxu0 0.0
    %40 = vmatpush1.msra.mxu0 0.0
    %41 = vmatprep.subr.mxu0 0.0
    %42 = vmatpush1.msra.mxu0 %v20
    %43 = vmatprep.subr.mxu0 0.0
    %44 = vmatpush1.msra.mxu0 %v19
    %45 = vmatprep.subr.mxu0 0.0
    %46 = vmatpush1.msra.mxu0 %v18
    %47 = vmatprep.subr.mxu0 0.0
    %48 = vmatpush1.msra.mxu0 %v17
    %49 = vmatprep.subr.mxu0 0.0
    %50 = vmatpush1.msra.mxu0 %v16
    %51 = vmatprep.subr.mxu0 0.0
    %52 = vmatpush1.msra.mxu0 %v15
    %53 = vmatprep.subr.mxu0 0.0
    %54 = vmatpush1.msra.mxu0 %v14
    %55 = vmatprep.subr.mxu0 0.0
    %56 = vmatpush1.msra.mxu0 %v13
    %57 = vmatprep.subr.mxu0 0.0
    %58 = vmatpush2.msra.mxu0 0.0
    %59 = vmatprep.subr.mxu0 0.0
    %60 = vmatpush2.msra.mxu0 0.0
    %61 = vmatprep.subr.mxu0 0.0
    %62 = vmatpush2.msra.mxu0 0.0
    %63 = vmatprep.subr.mxu0 0.0
    %64 = vmatpush2.msra.mxu0 0.0
    %65 = vmatprep.subr.mxu0 0.0
    %66 = vmatpush2.msra.mxu0 0.0
    %67 = vmatprep.subr.mxu0 0.0
    %68 = vmatpush2.msra.mxu0 0.0
    %69 = vmatprep.subr.mxu0 0.0
    %70 = vmatpush2.msra.mxu0 0.0
    %71 = vmatprep.subr.mxu0 0.0
    %72 = vmatpush2.msra.mxu0 0.0
    %73 = vmatprep.subr.mxu0 0.0
    %74 = vmatpush2.msra.mxu0 0.0
    %75 = vmatprep.subr.mxu0 0.0
    %76 = vmatpush2.msra.mxu0 0.0
    %77 = vmatprep.subr.mxu0 0.0
    %78 = vmatpush2.msra.mxu0 0.0
    %79 = vmatprep.subr.mxu0 0.0
    %80 = vmatpush2.msra.mxu0 0.0
    %81 = vmatprep.subr.mxu0 0.0
    %82 = vmatpush2.msra.mxu0 0.0
    %83 = vmatprep.subr.mxu0 0.0
    %84 = vmatpush2.msra.mxu0 0.0
    %85 = vmatprep.subr.mxu0 0.0
    %86 = vmatpush2.msra.mxu0 0.0
    %87 = vmatprep.subr.mxu0 0.0
    %88 = vmatpush2.msra.mxu0 0.0
    %89 = vmatprep.mubr.f32.mxu0 0.0
    %90 = vmatmul.mubr.f32.gmra.mxu0 %v23
    %v91 = vpop.f32.mrf.mxu0
    %v92 = vadd.f32 0.0, %v91
    %v93 = vpop.f32.mrf.mxu0
    %94 = vdwg.mxu0
    %vm95 = vcmask 130048
    %v96 = vsel %vm95, %v92, 0.0
    %v97 = vrot.slane %v96, 4
    %v98 = vadd.f32 %v96, %v97
    %v99 = vrot.slane %v98, 2
    %v100 = vadd.f32 %v98, %v99
    %v101 = vrot.slane %v100, 1
    %v102 = vadd.f32 %v100, %v101
    %v103 = vrcp.pop 8.0
    %v104 = vmul.f32 %v102, %v103
    %v105 = vsub.f32 %v92, %v104
    %v106 = vmul.f32 %v105, %v105
    %v107 = vsel %vm95, %v106, 0.0
    %v108 = vrot.slane %v107, 4
    %v109 = vadd.f32 %v107, %v108
    %v110 = vrot.slane %v109, 2
    %v111 = vadd.f32 %v109, %v110
    %v112 = vrot.slane %v111, 1
    %v113 = vadd.f32 %v111, %v112
    %v114 = vmul.f32 %v113, %v103
    %v115 = vadd.f32 %v114, 0.0001
    %v116 = vrsqrt.pop %v115
    %v117 = vmul.f32 %v105, %v116
    %118 = vst.msk [vmem:[#allocation2] sm:$0xff] %vm95, %v117
    // Predicated region
    $region10: #{enc_forward.7} parent=1 // pred_check
      _
    $region11: #{enc_forward.7} parent=1 // pred_check_branch
      %120 = sbr.rel (0) target = $region13
    $region12: #{enc_forward.7} parent=1 // pred_region
      %s122 = ssub.s32 128, 128
      %123 = vsyncadd [#allocation3], %s122
      %s125 = sshll.u32 [#allocation2], 4
      %s126 = int_to_ptr.vmem [resolvable:$true] %s125
      %128 = dma.vmem_to_hbm [thread:$0]  %s126, 128, %s2, [#allocation3]
    $region13: #{enc_forward.7} parent=1 // pred_fallthru
      _
    // Predicated region
    $region14: #{enc_forward.7} parent=1 // pred_check
      _
    $region15: #{enc_forward.7} parent=1 // pred_check_branch
      %130 = sbr.rel (0) target = $region17
    $region16: #{enc_forward.7} parent=1 // pred_region
      %131 = dma.done [#allocation3], 128
    $region17: #{enc_forward.7} parent=1 // pred_fallthru
      _
    %132 = vsyncpa [#allocation3], 1

// kernel: enc_forward.6
$region0: #{enc_forward.6}
  #allocation0 [shape = 'u32[]', space=smem, size = 0x4, offset = 0x4, fixed_abs, tag = 'smem constant byte address 0x4 - core index']
  #allocation1 [shape = 'u32[144,128]{1,0:T(1,128)}', space=vmem, size = 0x12000, scoped, tag = 'internal scratch']
  %s0 = inlined_call_operand.vmem [shape: f32[4,144,32], index: 0, kind: input, shape index: {}]
  %s1 = inlined_call_operand.vmem [shape: f32[16,144], index: 1, kind: input, shape index: {}]
  %s2 = inlined_call_operand.vmem [shape: f32[16,32], index: 2, kind: output, shape index: {}]
  %s3 = sld [smem:[#allocation0]]
  $region18: #{enc_forward.6} parent=0
    _
  %s5 = ssub.s32 1, %s3
  %s6 = scalar_select 0, %s5, %s3
  // Predicated region
  $region2: #{enc_forward.6} parent=0 // pred_check
    _
  $region3: #{enc_forward.6} parent=0 // pred_check_branch
    %8 = sbr.rel (0) target = $region5
  $region4: #{enc_forward.6} parent=0 // pred_region
    _
  $region5: #{enc_forward.6} parent=0 // pred_fallthru
    _
  // Predicated region
  $region6: #{enc_forward.6} parent=0 // pred_check
    _
  $region7: #{enc_forward.6} parent=0 // pred_check_branch
    %10 = sbr.rel (0) target = $region9
  $region8: #{enc_forward.6} parent=0 // pred_region
    _
  $region9: #{enc_forward.6} parent=0 // pred_fallthru
    _
  %v11 = vld [vmem:[%s1] sm:$0xff]
  %v12 = vld [vmem:[%s1 + $0x8] sm:$0xff]
  %v13 = vld [vmem:[%s1 + $0x10] sm:$0xff]
  %v14 = vld [vmem:[%s1 + $0x18] sm:$0xff]
  %v15 = vld [vmem:[%s0] sm:$0xff]
  %v16 = vld [vmem:[%s0 + $0x8] sm:$0xff]
  %v17 = vld [vmem:[%s0 + $0x10] sm:$0xff]
  %v18 = vld [vmem:[%s0 + $0x18] sm:$0xff]
  %v19 = vld [vmem:[%s0 + $0x20] sm:$0xff]
  %v20 = vld [vmem:[%s0 + $0x28] sm:$0xff]
  %v21 = vld [vmem:[%s0 + $0x30] sm:$0xff]
  %v22 = vld [vmem:[%s0 + $0x38] sm:$0xff]
  %v23 = vld [vmem:[%s0 + $0x40] sm:$0xff]
  %v24 = vld [vmem:[%s0 + $0x48] sm:$0xff]
  %v25 = vld [vmem:[%s0 + $0x50] sm:$0xff]
  %v26 = vld [vmem:[%s0 + $0x58] sm:$0xff]
  %v27 = vld [vmem:[%s0 + $0x60] sm:$0xff]
  %v28 = vld [vmem:[%s0 + $0x68] sm:$0xff]
  %v29 = vld [vmem:[%s0 + $0x70] sm:$0xff]
  %v30 = vld [vmem:[%s0 + $0x78] sm:$0xff]
  %v31 = vld [vmem:[%s0 + $0x80] sm:$0xff]
  %v32 = vld [vmem:[%s0 + $0x88] sm:$0xff]
  %vm33 = vcmask 130048
  %v35 = vsel %vm33, %v12, 0
  %v38 = vsel %vm33, %v14, 0
  %40 = vmatprep.subr.mxu0 0.0
  %41 = vmatpush1.msra.mxu0 %v30
  %42 = vmatprep.subr.mxu0 0.0
  %43 = vmatpush1.msra.mxu0 %v29
  %44 = vmatprep.subr.mxu0 0.0
  %45 = vmatpush1.msra.mxu0 %v28
  %46 = vmatprep.subr.mxu0 0.0
  %47 = vmatpush1.msra.mxu0 %v27
  %48 = vmatprep.subr.mxu0 0.0
  %49 = vmatpush1.msra.mxu0 %v26
  %50 = vmatprep.subr.mxu0 0.0
  %51 = vmatpush1.msra.mxu0 %v25
  %52 = vmatprep.subr.mxu0 0.0
  %53 = vmatpush1.msra.mxu0 %v24
  %54 = vmatprep.subr.mxu0 0.0
  %55 = vmatpush1.msra.mxu0 %v23
  %56 = vmatprep.subr.mxu0 0.0
  %57 = vmatpush1.msra.mxu0 %v22
  %58 = vmatprep.subr.mxu0 0.0
  %59 = vmatpush1.msra.mxu0 %v21
  %60 = vmatprep.subr.mxu0 0.0
  %61 = vmatpush1.msra.mxu0 %v20
  %62 = vmatprep.subr.mxu0 0.0
  %63 = vmatpush1.msra.mxu0 %v19
  %64 = vmatprep.subr.mxu0 0.0
  %65 = vmatpush1.msra.mxu0 %v18
  %66 = vmatprep.subr.mxu0 0.0
  %67 = vmatpush1.msra.mxu0 %v17
  %68 = vmatprep.subr.mxu0 0.0
  %69 = vmatpush1.msra.mxu0 %v16
  %70 = vmatprep.subr.mxu0 0.0
  %71 = vmatpush1.msra.mxu0 %v15
  %72 = vmatprep.subr.mxu0 0.0
  %73 = vmatpush2.msra.mxu0 0.0
  %74 = vmatprep.subr.mxu0 0.0
  %75 = vmatpush2.msra.mxu0 0.0
  %76 = vmatprep.subr.mxu0 0.0
  %77 = vmatpush2.msra.mxu0 0.0
  %78 = vmatprep.subr.mxu0 0.0
  %79 = vmatpush2.msra.mxu0 0.0
  %80 = vmatprep.subr.mxu0 0.0
  %81 = vmatpush2.msra.mxu0 0.0
  %82 = vmatprep.subr.mxu0 0.0
  %83 = vmatpush2.msra.mxu0 0.0
  %84 = vmatprep.subr.mxu0 0.0
  %85 = vmatpush2.msra.mxu0 0.0
  %86 = vmatprep.subr.mxu0 0.0
  %87 = vmatpush2.msra.mxu0 0.0
  %88 = vmatprep.subr.mxu0 0.0
  %89 = vmatpush2.msra.mxu0 0.0
  %90 = vmatprep.subr.mxu0 0.0
  %91 = vmatpush2.msra.mxu0 0.0
  %92 = vmatprep.subr.mxu0 0.0
  %93 = vmatpush2.msra.mxu0 0.0
  %94 = vmatprep.subr.mxu0 0.0
  %95 = vmatpush2.msra.mxu0 0.0
  %96 = vmatprep.subr.mxu0 0.0
  %97 = vmatpush2.msra.mxu0 0.0
  %98 = vmatprep.subr.mxu0 0.0
  %99 = vmatpush2.msra.mxu0 0.0
  %100 = vmatprep.subr.mxu0 0.0
  %101 = vmatpush2.msra.mxu0 %v32
  %102 = vmatprep.subr.mxu0 0.0
  %103 = vmatpush2.msra.mxu0 %v31
  %104 = vmatprep.mubr.f32.mxu0 %v35
  %105 = vmatmul.mubr.f32.gmra.mxu0 %v11
  %v106 = vpop.f32.mrf.mxu0
  %v107 = vadd.f32 0.0, %v106
  %v108 = vpop.f32.mrf.mxu0
  %109 = vmatprep.mubr.f32.mxu0 %v38
  %110 = vmatmul.mubr.f32.gmra.mxu0 %v13
  %v111 = vpop.f32.mrf.mxu0
  %v112 = vadd.f32 0.0, %v111
  %v113 = vpop.f32.mrf.mxu0
  %114 = vdwg.mxu0
  %s115 = scalar_lea.vmem %s0, 144
  %v116 = vld [vmem:[%s115] sm:$0xff]
  %v117 = vld [vmem:[%s115 + $0x8] sm:$0xff]
  %v118 = vld [vmem:[%s115 + $0x10] sm:$0xff]
  %v119 = vld [vmem:[%s115 + $0x18] sm:$0xff]
  %v120 = vld [vmem:[%s115 + $0x20] sm:$0xff]
  %v121 = vld [vmem:[%s115 + $0x28] sm:$0xff]
  %v122 = vld [vmem:[%s115 + $0x30] sm:$0xff]
  %v123 = vld [vmem:[%s115 + $0x38] sm:$0xff]
  %v124 = vld [vmem:[%s115 + $0x40] sm:$0xff]
  %v125 = vld [vmem:[%s115 + $0x48] sm:$0xff]
  %v126 = vld [vmem:[%s115 + $0x50] sm:$0xff]
  %v127 = vld [vmem:[%s115 + $0x58] sm:$0xff]
  %v128 = vld [vmem:[%s115 + $0x60] sm:$0xff]
  %v129 = vld [vmem:[%s115 + $0x68] sm:$0xff]
  %v130 = vld [vmem:[%s115 + $0x70] sm:$0xff]
  %v131 = vld [vmem:[%s115 + $0x78] sm:$0xff]
  %v132 = vld [vmem:[%s115 + $0x80] sm:$0xff]
  %v133 = vld [vmem:[%s115 + $0x88] sm:$0xff]
  %134 = vmatprep.subr.mxu0 0.0
  %135 = vmatpush1.msra.mxu0 %v131
  %136 = vmatprep.subr.mxu0 0.0
  %137 = vmatpush1.msra.mxu0 %v130
  %138 = vmatprep.subr.mxu0 0.0
  %139 = vmatpush1.msra.mxu0 %v129
  %140 = vmatprep.subr.mxu0 0.0
  %141 = vmatpush1.msra.mxu0 %v128
  %142 = vmatprep.subr.mxu0 0.0
  %143 = vmatpush1.msra.mxu0 %v127
  %144 = vmatprep.subr.mxu0 0.0
  %145 = vmatpush1.msra.mxu0 %v126
  %146 = vmatprep.subr.mxu0 0.0
  %147 = vmatpush1.msra.mxu0 %v125
  %148 = vmatprep.subr.mxu0 0.0
  %149 = vmatpush1.msra.mxu0 %v124
  %150 = vmatprep.subr.mxu0 0.0
  %151 = vmatpush1.msra.mxu0 %v123
  %152 = vmatprep.subr.mxu0 0.0
  %153 = vmatpush1.msra.mxu0 %v122
  %154 = vmatprep.subr.mxu0 0.0
  %155 = vmatpush1.msra.mxu0 %v121
  %156 = vmatprep.subr.mxu0 0.0
  %157 = vmatpush1.msra.mxu0 %v120
  %158 = vmatprep.subr.mxu0 0.0
  %159 = vmatpush1.msra.mxu0 %v119
  %160 = vmatprep.subr.mxu0 0.0
  %161 = vmatpush1.msra.mxu0 %v118
  %162 = vmatprep.subr.mxu0 0.0
  %163 = vmatpush1.msra.mxu0 %v117
  %164 = vmatprep.subr.mxu0 0.0
  %165 = vmatpush1.msra.mxu0 %v116
  %166 = vmatprep.subr.mxu0 0.0
  %167 = vmatpush2.msra.mxu0 0.0
  %168 = vmatprep.subr.mxu0 0.0
  %169 = vmatpush2.msra.mxu0 0.0
  %170 = vmatprep.subr.mxu0 0.0
  %171 = vmatpush2.msra.mxu0 0.0
  %172 = vmatprep.subr.mxu0 0.0
  %173 = vmatpush2.msra.mxu0 0.0
  %174 = vmatprep.subr.mxu0 0.0
  %175 = vmatpush2.msra.mxu0 0.0
  %176 = vmatprep.subr.mxu0 0.0
  %177 = vmatpush2.msra.mxu0 0.0
  %178 = vmatprep.subr.mxu0 0.0
  %179 = vmatpush2.msra.mxu0 0.0
  %180 = vmatprep.subr.mxu0 0.0
  %181 = vmatpush2.msra.mxu0 0.0
  %182 = vmatprep.subr.mxu0 0.0
  %183 = vmatpush2.msra.mxu0 0.0
  %184 = vmatprep.subr.mxu0 0.0
  %185 = vmatpush2.msra.mxu0 0.0
  %186 = vmatprep.subr.mxu0 0.0
  %187 = vmatpush2.msra.mxu0 0.0
  %188 = vmatprep.subr.mxu0 0.0
  %189 = vmatpush2.msra.mxu0 0.0
  %190 = vmatprep.subr.mxu0 0.0
  %191 = vmatpush2.msra.mxu0 0.0
  %192 = vmatprep.subr.mxu0 0.0
  %193 = vmatpush2.msra.mxu0 0.0
  %194 = vmatprep.subr.mxu0 0.0
  %195 = vmatpush2.msra.mxu0 %v133
  %196 = vmatprep.subr.mxu0 0.0
  %197 = vmatpush2.msra.mxu0 %v132
  %198 = vmatprep.mubr.f32.mxu0 %v35
  %199 = vmatmul.mubr.f32.gmra.mxu0 %v11
  %v200 = vpop.f32.mrf.mxu0
  %v201 = vadd.f32 0.0, %v200
  %v202 = vpop.f32.mrf.mxu0
  %203 = vmatprep.mubr.f32.mxu0 %v38
  %204 = vmatmul.mubr.f32.gmra.mxu0 %v13
  %v205 = vpop.f32.mrf.mxu0
  %v206 = vadd.f32 0.0, %v205
  %v207 = vpop.f32.mrf.mxu0
  %208 = vdwg.mxu0
  %s209 = scalar_lea.vmem %s0, 288
  %v210 = vld [vmem:[%s209] sm:$0xff]
  %v211 = vld [vmem:[%s209 + $0x8] sm:$0xff]
  %v212 = vld [vmem:[%s209 + $0x10] sm:$0xff]
  %v213 = vld [vmem:[%s209 + $0x18] sm:$0xff]
  %v214 = vld [vmem:[%s209 + $0x20] sm:$0xff]
  %v215 = vld [vmem:[%s209 + $0x28] sm:$0xff]
  %v216 = vld [vmem:[%s209 + $0x30] sm:$0xff]
  %v217 = vld [vmem:[%s209 + $0x38] sm:$0xff]
  %v218 = vld [vmem:[%s209 + $0x40] sm:$0xff]
  %v219 = vld [vmem:[%s209 + $0x48] sm:$0xff]
  %v220 = vld [vmem:[%s209 + $0x50] sm:$0xff]
  %v221 = vld [vmem:[%s209 + $0x58] sm:$0xff]
  %v222 = vld [vmem:[%s209 + $0x60] sm:$0xff]
  %v223 = vld [vmem:[%s209 + $0x68] sm:$0xff]
  %v224 = vld [vmem:[%s209 + $0x70] sm:$0xff]
  %v225 = vld [vmem:[%s209 + $0x78] sm:$0xff]
  %v226 = vld [vmem:[%s209 + $0x80] sm:$0xff]
  %v227 = vld [vmem:[%s209 + $0x88] sm:$0xff]
  %228 = vmatprep.subr.mxu0 0.0
  %229 = vmatpush1.msra.mxu0 %v225
  %230 = vmatprep.subr.mxu0 0.0
  %231 = vmatpush1.msra.mxu0 %v224
  %232 = vmatprep.subr.mxu0 0.0
  %233 = vmatpush1.msra.mxu0 %v223
  %234 = vmatprep.subr.mxu0 0.0
  %235 = vmatpush1.msra.mxu0 %v222
  %236 = vmatprep.subr.mxu0 0.0
  %237 = vmatpush1.msra.mxu0 %v221
  %238 = vmatprep.subr.mxu0 0.0
  %239 = vmatpush1.msra.mxu0 %v220
  %240 = vmatprep.subr.mxu0 0.0
  %241 = vmatpush1.msra.mxu0 %v219
  %242 = vmatprep.subr.mxu0 0.0
  %243 = vmatpush1.msra.mxu0 %v218
  %244 = vmatprep.subr.mxu0 0.0
  %245 = vmatpush1.msra.mxu0 %v217
  %246 = vmatprep.subr.mxu0 0.0
  %247 = vmatpush1.msra.mxu0 %v216
  %248 = vmatprep.subr.mxu0 0.0
  %249 = vmatpush1.msra.mxu0 %v215
  %250 = vmatprep.subr.mxu0 0.0
  %251 = vmatpush1.msra.mxu0 %v214
  %252 = vmatprep.subr.mxu0 0.0
  %253 = vmatpush1.msra.mxu0 %v213
  %254 = vmatprep.subr.mxu0 0.0
  %255 = vmatpush1.msra.mxu0 %v212
  %256 = vmatprep.subr.mxu0 0.0
  %257 = vmatpush1.msra.mxu0 %v211
  %258 = vmatprep.subr.mxu0 0.0
  %259 = vmatpush1.msra.mxu0 %v210
  %260 = vmatprep.subr.mxu0 0.0
  %261 = vmatpush2.msra.mxu0 0.0
  %262 = vmatprep.subr.mxu0 0.0
  %263 = vmatpush2.msra.mxu0 0.0
  %264 = vmatprep.subr.mxu0 0.0
  %265 = vmatpush2.msra.mxu0 0.0
  %266 = vmatprep.subr.mxu0 0.0
  %267 = vmatpush2.msra.mxu0 0.0
  %268 = vmatprep.subr.mxu0 0.0
  %269 = vmatpush2.msra.mxu0 0.0
  %270 = vmatprep.subr.mxu0 0.0
  %271 = vmatpush2.msra.mxu0 0.0
  %272 = vmatprep.subr.mxu0 0.0
  %273 = vmatpush2.msra.mxu0 0.0
  %274 = vmatprep.subr.mxu0 0.0
  %275 = vmatpush2.msra.mxu0 0.0
  %276 = vmatprep.subr.mxu0 0.0
  %277 = vmatpush2.msra.mxu0 0.0
  %278 = vmatprep.subr.mxu0 0.0
  %279 = vmatpush2.msra.mxu0 0.0
  %280 = vmatprep.subr.mxu0 0.0
  %281 = vmatpush2.msra.mxu0 0.0
  %282 = vmatprep.subr.mxu0 0.0
  %283 = vmatpush2.msra.mxu0 0.0
  %284 = vmatprep.subr.mxu0 0.0
  %285 = vmatpush2.msra.mxu0 0.0
  %286 = vmatprep.subr.mxu0 0.0
  %287 = vmatpush2.msra.mxu0 0.0
  %288 = vmatprep.subr.mxu0 0.0
  %289 = vmatpush2.msra.mxu0 %v227
  %290 = vmatprep.subr.mxu0 0.0
  %291 = vmatpush2.msra.mxu0 %v226
  %292 = vmatprep.mubr.f32.mxu0 %v35
  %293 = vmatmul.mubr.f32.gmra.mxu0 %v11
  %v294 = vpop.f32.mrf.mxu0
  %v295 = vadd.f32 0.0, %v294
  %v296 = vpop.f32.mrf.mxu0
  %297 = vmatprep.mubr.f32.mxu0 %v38
  %298 = vmatmul.mubr.f32.gmra.mxu0 %v13
  %v299 = vpop.f32.mrf.mxu0
  %v300 = vadd.f32 0.0, %v299
  %v301 = vpop.f32.mrf.mxu0
  %302 = vdwg.mxu0
  %s303 = scalar_lea.vmem %s0, 432
  %v304 = vld [vmem:[%s303] sm:$0xff]
  %v305 = vld [vmem:[%s303 + $0x8] sm:$0xff]
  %v306 = vld [vmem:[%s303 + $0x10] sm:$0xff]
  %v307 = vld [vmem:[%s303 + $0x18] sm:$0xff]
  %v308 = vld [vmem:[%s303 + $0x20] sm:$0xff]
  %v309 = vld [vmem:[%s303 + $0x28] sm:$0xff]
  %v310 = vld [vmem:[%s303 + $0x30] sm:$0xff]
  %v311 = vld [vmem:[%s303 + $0x38] sm:$0xff]
  %v312 = vld [vmem:[%s303 + $0x40] sm:$0xff]
  %v313 = vld [vmem:[%s303 + $0x48] sm:$0xff]
  %v314 = vld [vmem:[%s303 + $0x50] sm:$0xff]
  %v315 = vld [vmem:[%s303 + $0x58] sm:$0xff]
  %v316 = vld [vmem:[%s303 + $0x60] sm:$0xff]
  %v317 = vld [vmem:[%s303 + $0x68] sm:$0xff]
  %v318 = vld [vmem:[%s303 + $0x70] sm:$0xff]
  %v319 = vld [vmem:[%s303 + $0x78] sm:$0xff]
  %v320 = vld [vmem:[%s303 + $0x80] sm:$0xff]
  %v321 = vld [vmem:[%s303 + $0x88] sm:$0xff]
  %322 = vmatprep.subr.mxu0 0.0
  %323 = vmatpush1.msra.mxu0 %v319
  %324 = vmatprep.subr.mxu0 0.0
  %325 = vmatpush1.msra.mxu0 %v318
  %326 = vmatprep.subr.mxu0 0.0
  %327 = vmatpush1.msra.mxu0 %v317
  %328 = vmatprep.subr.mxu0 0.0
  %329 = vmatpush1.msra.mxu0 %v316
  %330 = vmatprep.subr.mxu0 0.0
  %331 = vmatpush1.msra.mxu0 %v315
  %332 = vmatprep.subr.mxu0 0.0
  %333 = vmatpush1.msra.mxu0 %v314
  %334 = vmatprep.subr.mxu0 0.0
  %335 = vmatpush1.msra.mxu0 %v313
  %336 = vmatprep.subr.mxu0 0.0
  %337 = vmatpush1.msra.mxu0 %v312
  %338 = vmatprep.subr.mxu0 0.0
  %339 = vmatpush1.msra.mxu0 %v311
  %340 = vmatprep.subr.mxu0 0.0
  %341 = vmatpush1.msra.mxu0 %v310
  %342 = vmatprep.subr.mxu0 0.0
  %343 = vmatpush1.msra.mxu0 %v309
  %344 = vmatprep.subr.mxu0 0.0
  %345 = vmatpush1.msra.mxu0 %v308
  %346 = vmatprep.subr.mxu0 0.0
  %347 = vmatpush1.msra.mxu0 %v307
  %348 = vmatprep.subr.mxu0 0.0
  %349 = vmatpush1.msra.mxu0 %v306
  %350 = vmatprep.subr.mxu0 0.0
  %351 = vmatpush1.msra.mxu0 %v305
  %352 = vmatprep.subr.mxu0 0.0
  %353 = vmatpush1.msra.mxu0 %v304
  %354 = vmatprep.subr.mxu0 0.0
  %355 = vmatpush2.msra.mxu0 0.0
  %356 = vmatprep.subr.mxu0 0.0
  %357 = vmatpush2.msra.mxu0 0.0
  %358 = vmatprep.subr.mxu0 0.0
  %359 = vmatpush2.msra.mxu0 0.0
  %360 = vmatprep.subr.mxu0 0.0
  %361 = vmatpush2.msra.mxu0 0.0
  %362 = vmatprep.subr.mxu0 0.0
  %363 = vmatpush2.msra.mxu0 0.0
  %364 = vmatprep.subr.mxu0 0.0
  %365 = vmatpush2.msra.mxu0 0.0
  %366 = vmatprep.subr.mxu0 0.0
  %367 = vmatpush2.msra.mxu0 0.0
  %368 = vmatprep.subr.mxu0 0.0
  %369 = vmatpush2.msra.mxu0 0.0
  %370 = vmatprep.subr.mxu0 0.0
  %371 = vmatpush2.msra.mxu0 0.0
  %372 = vmatprep.subr.mxu0 0.0
  %373 = vmatpush2.msra.mxu0 0.0
  %374 = vmatprep.subr.mxu0 0.0
  %375 = vmatpush2.msra.mxu0 0.0
  %376 = vmatprep.subr.mxu0 0.0
  %377 = vmatpush2.msra.mxu0 0.0
  %378 = vmatprep.subr.mxu0 0.0
  %379 = vmatpush2.msra.mxu0 0.0
  %380 = vmatprep.subr.mxu0 0.0
  %381 = vmatpush2.msra.mxu0 0.0
  %382 = vmatprep.subr.mxu0 0.0
  %383 = vmatpush2.msra.mxu0 %v321
  %384 = vmatprep.subr.mxu0 0.0
  %385 = vmatpush2.msra.mxu0 %v320
  %386 = vmatprep.mubr.f32.mxu0 %v35
  %387 = vmatmul.mubr.f32.gmra.mxu0 %v11
  %v388 = vpop.f32.mrf.mxu0
  %v389 = vadd.f32 0.0, %v388
  %v390 = vpop.f32.mrf.mxu0
  %391 = vmatprep.mubr.f32.mxu0 %v38
  %392 = vmatmul.mubr.f32.gmra.mxu0 %v13
  %v393 = vpop.f32.mrf.mxu0
  %v394 = vadd.f32 0.0, %v393
  %v395 = vpop.f32.mrf.mxu0
  %396 = vdwg.mxu0
  %v397 = vadd.f32 %v107, %v201
  %v398 = vadd.f32 %v112, %v206
  %v399 = vadd.f32 %v397, %v295
  %v400 = vadd.f32 %v398, %v300
  %v401 = vadd.f32 %v399, %v389
  %v402 = vadd.f32 %v400, %v394
  %vm403 = vcmask 261120
  %v404 = vsel %vm403, %v401, 0.0
  %405 = vadd.xlane.f32.xlu0 %v404
  %v406 = vpop.xlane.xlu0 %405
  %v407 = vsel %vm403, %v402, 0.0
  %408 = vadd.xlane.f32.xlu0 %v407
  %v409 = vpop.xlane.xlu0 %408
  %v410 = vrcp.pop 128.0
  %v411 = vmul.f32 %v406, %v410
  %v412 = vmul.f32 %v409, %v410
  %v413 = vsub.f32 %v107, %v411
  %v414 = vsub.f32 %v112, %v412
  %v415 = vmul.f32 %v413, %v413
  %v416 = vmul.f32 %v414, %v414
  %v417 = vsel %vm403, %v415, 0.0
  %418 = vadd.xlane.f32.xlu0 %v417
  %v419 = vpop.xlane.xlu0 %418
  %v420 = vsel %vm403, %v416, 0.0
  %421 = vadd.xlane.f32.xlu0 %v420
  %v422 = vpop.xlane.xlu0 %421
  %v423 = vsub.f32 %v201, %v411
  %v424 = vsub.f32 %v206, %v412
  %v425 = vmul.f32 %v423, %v423
  %v426 = vmul.f32 %v424, %v424
  %v427 = vsel %vm403, %v425, 0.0
  %428 = vadd.xlane.f32.xlu0 %v427
  %v429 = vpop.xlane.xlu0 %428
  %v430 = vsel %vm403, %v426, 0.0
  %431 = vadd.xlane.f32.xlu0 %v430
  %v432 = vpop.xlane.xlu0 %431
  %v433 = vadd.f32 %v419, %v429
  %v434 = vadd.f32 %v422, %v432
  %v435 = vsub.f32 %v295, %v411
  %v436 = vsub.f32 %v300, %v412
  %v437 = vmul.f32 %v435, %v435
  %v438 = vmul.f32 %v436, %v436
  %v439 = vsel %vm403, %v437, 0.0
  %440 = vadd.xlane.f32.xlu0 %v439
  %v441 = vpop.xlane.xlu0 %440
  %v442 = vsel %vm403, %v438, 0.0
  %443 = vadd.xlane.f32.xlu0 %v442
  %v444 = vpop.xlane.xlu0 %443
  %v445 = vadd.f32 %v433, %v441
  %v446 = vadd.f32 %v434, %v444
  %v447 = vsub.f32 %v389, %v411
  %v448 = vsub.f32 %v394, %v412
  %v449 = vmul.f32 %v447, %v447
  %v450 = vmul.f32 %v448, %v448
  %v451 = vsel %vm403, %v449, 0.0
  %452 = vadd.xlane.f32.xlu0 %v451
  %v453 = vpop.xlane.xlu0 %452
  %v454 = vsel %vm403, %v450, 0.0
  %455 = vadd.xlane.f32.xlu0 %v454
  %v456 = vpop.xlane.xlu0 %455
  %v457 = vadd.f32 %v445, %v453
  %v458 = vadd.f32 %v446, %v456
  %v459 = vmul.f32 %v457, %v410
  %v460 = vmul.f32 %v458, %v410
  %v461 = vadd.f32 %v459, 0.0001
  %v462 = vadd.f32 %v460, 0.0001
  %v463 = vrsqrt.pop %v461
  %v464 = vrsqrt.pop %v462
  %v465 = vmax.f32 %v107, %v201
  %v466 = vmax.f32 %v112, %v206
  %v467 = vmax.f32 %v295, %v389
  %v468 = vmax.f32 %v300, %v394
  %v469 = vmax.f32 %v465, %v467
  %v470 = vmax.f32 %v466, %v468
  %v471 = vsub.f32 %v469, %v411
  %v472 = vsub.f32 %v470, %v412
  %v473 = vmul.f32 %v471, %v463
  %v474 = vmul.f32 %v472, %v464
  %vm475 = vcmp.gt.f32.partialorder %v473, 0.0
  %vm476 = vcmp.gt.f32.partialorder %v474, 0.0
  %v477 = vmul.f32 %v473, 1.442695
  %v478 = vpow.pop %v477
  %v479 = vmul.f32 %v474, 1.442695
  %v480 = vpow.pop %v479
  %v481 = vsub.f32 %v478, 1.0
  %v482 = vsub.f32 %v480, 1.0
  %v483 = vsel %vm475, %v473, %v481
  %v484 = vsel %vm476, %v474, %v482
  %485 = vst.msk [vmem:[%s2] sm:$0xff] %vm403, %v483
  %486 = vst.msk [vmem:[%s2 + $0x8] sm:$0xff] %vm403, %v484
  // Predicated region
  $region10: #{enc_forward.6} parent=0 // pred_check
    _
  $region11: #{enc_forward.6} parent=0 // pred_check_branch
    %488 = sbr.rel (0) target = $region13
  $region12: #{enc_forward.6} parent=0 // pred_region
    _
  $region13: #{enc_forward.6} parent=0 // pred_fallthru
    _
  // Predicated region
  $region14: #{enc_forward.6} parent=0 // pred_check
    _
  $region15: #{enc_forward.6} parent=0 // pred_check_branch
    %490 = sbr.rel (0) target = $region17
  $region16: #{enc_forward.6} parent=0 // pred_region
    _
  $region17: #{enc_forward.6} parent=0 // pred_fallthru
    _

</llo_original>
